<compile_context>
chip_gen: v6e
topology: v6e:2x2x1
jax: 0.10.0
libtpu: 0.0.40
codegen_flags: <defaults>
</compile_context>

<pallas_src>
import jax
import jax.numpy as jnp
from jax import lax
from jax.experimental import pallas as pl
from jax.experimental.pallas import tpu as pltpu

# ---- small test configuration (module defaults, scaled down) ----
B, S = 2, 8
MODEL_DIM = 32
OUT_DIM = 32          # must equal MODEL_DIM for the residual adds
NUM_HEADS = 4
FFN_DIM = 64
EPS = 1e-5            # torch.nn.LayerNorm default eps
ROW_BLK = 8           # rows of (B*S) per grid step; multiple of the 8-sublane tile


# ----------------------------- in-kernel helpers ------------------------------------
def _layer_norm(y, g, b):
    # PyTorch LayerNorm: biased variance over the last axis; math kept in f32.
    mean = jnp.mean(y, axis=-1, keepdims=True)
    var = jnp.mean(jnp.square(y - mean), axis=-1, keepdims=True)
    return (y - mean) * lax.rsqrt(var + EPS) * g + b


# ----------------------------------- kernels -----------------------------------------
def qkv_kernel(x_ref, w_ref, b_ref, qkv_ref):
    """Fused Q/K/V projection: one (ROW_BLK, D) x (D, 3D) bf16 matmul, f32 accumulate."""
    x = x_ref[...].astype(jnp.bfloat16)
    qkv_ref[...] = (jnp.dot(x, w_ref[...], preferred_element_type=jnp.float32)
                    + b_ref[...])


def sdpa_kernel(q_ref, k_ref, v_ref, ctx_ref, attn_ref):
    """Scaled dot-product attention for all H heads of one batch element: (H, S, d) blocks.

    The 1/sqrt(d) scale is already folded into the Q projection weights.
    """
    q = q_ref[...].astype(jnp.bfloat16)   # (H, S, d)
    k = k_ref[...].astype(jnp.bfloat16)   # (H, S, d)
    v = v_ref[...].astype(jnp.bfloat16)   # (H, S, d)
    s = jnp.einsum("hqd,hkd->hqk", q, k, preferred_element_type=jnp.float32)
    m = jnp.max(s, axis=-1, keepdims=True)
    e = jnp.exp(s - m)
    denom = jnp.sum(e, axis=-1, keepdims=True)
    p = e * pl.reciprocal(denom, approx=True)     # EUP reciprocal, off the VALU path
    attn_ref[...] = p
    ctx_ref[...] = jnp.einsum("hqk,hkd->hqd", p.astype(jnp.bfloat16), v,
                              preferred_element_type=jnp.float32)


def tail_kernel(ctx_ref, res_ref, wo_ref, bo_ref, g1_ref, bn1_ref,
                w1_ref, b1_ref, w2_ref, b2_ref, g2_ref, bn2_ref, out_ref):
    """Attention output projection + residual + LN1, then FFN (w2(relu(w1(.))) + residual) + LN2."""
    y = (jnp.dot(ctx_ref[...].astype(jnp.bfloat16), wo_ref[...],
                 preferred_element_type=jnp.float32) + bo_ref[...])
    a = _layer_norm(y + res_ref[...], g1_ref[...], bn1_ref[...])
    h = jnp.maximum(
        jnp.dot(a.astype(jnp.bfloat16), w1_ref[...],
                preferred_element_type=jnp.float32) + b1_ref[...], 0.0)
    y2 = (jnp.dot(h.astype(jnp.bfloat16), w2_ref[...],
                  preferred_element_type=jnp.float32) + b2_ref[...])
    out_ref[...] = _layer_norm(y2 + a, g2_ref[...], bn2_ref[...])


# --------------------------------- wrapper -------------------------------------------
def encoder_layer(x, p):
    """x: (B, S, MODEL_DIM) float32.  Returns (output (B,S,OUT_DIM), attention (B*H,S,S))."""
    assert OUT_DIM == MODEL_DIM, "residual adds in EncoderLayer require out_dim == model_dim"
    B_, S_, D = x.shape
    H = NUM_HEADS
    d = D // H
    rows = B_ * S_
    n_row_blk = rows // ROW_BLK
    x2 = x.reshape(rows, D)

    # Parameter prep: concat Q/K/V weights, fold the attention scale into the Q part,
    # cast matmul weights to bf16 (biases / LN params stay f32).  Tiny one-time XLA ops.
    scale = float(d) ** -0.5
    wqkv = jnp.concatenate([p["wq_t"] * scale, p["wk_t"], p["wv_t"]],
                           axis=1).astype(jnp.bfloat16)          # (D, 3D)
    bqkv = jnp.concatenate([p["bq"] * scale, p["bk"], p["bv"]], axis=1)   # (1, 3D) f32

    full2d = lambda i: (0, 0)

    # ---- kernel 1: fused QKV projection, gridded (parallel) over row blocks ----
    qkv = pl.pallas_call(
        qkv_kernel,
        grid=(n_row_blk,),
        in_specs=[pl.BlockSpec((ROW_BLK, D), lambda i: (i, 0)),
                  pl.BlockSpec((D, 3 * D), full2d),
                  pl.BlockSpec((1, 3 * D), full2d)],
        out_specs=pl.BlockSpec((ROW_BLK, 3 * D), lambda i: (i, 0)),
        out_shape=jax.ShapeDtypeStruct((rows, 3 * D), jnp.float32),
        compiler_params=pltpu.CompilerParams(dimension_semantics=("parallel",)),
    )(x2, wqkv, bqkv)

    # Replicates torch .view(batch*num_heads, -1, dim_per_head) (row-major, contiguous).
    qh = qkv[:, :D].reshape(B_ * H, S_, d)
    kh = qkv[:, D:2 * D].reshape(B_ * H, S_, d)
    vh = qkv[:, 2 * D:].reshape(B_ * H, S_, d)

    # ---- kernel 2: batched SDPA, one grid step per batch element (all H heads per block) ----
    head_spec = pl.BlockSpec((H, S_, d), lambda b: (b, 0, 0))
    ctx_h, attn = pl.pallas_call(
        sdpa_kernel,
        grid=(B_,),
        in_specs=[head_spec, head_spec, head_spec],
        out_specs=(pl.BlockSpec((H, S_, d), lambda b: (b, 0, 0)),
                   pl.BlockSpec((H, S_, S_), lambda b: (b, 0, 0))),
        out_shape=(jax.ShapeDtypeStruct((B_ * H, S_, d), jnp.float32),
                   jax.ShapeDtypeStruct((B_ * H, S_, S_), jnp.float32)),
        compiler_params=pltpu.CompilerParams(dimension_semantics=("parallel",)),
    )(qh, kh, vh)

    # torch: context.view(batch, -1, dim_per_head * num_heads)  (contiguous reshape)
    ctx2 = ctx_h.reshape(rows, D)

    # ---- kernel 3: out-proj + residual + LN1 + FFN + residual + LN2, fused ----
    ctx_spec = pl.BlockSpec((ROW_BLK, D), lambda i: (i, 0))
    out2 = pl.pallas_call(
        tail_kernel,
        grid=(n_row_blk,),
        in_specs=[ctx_spec, ctx_spec,
                  pl.BlockSpec((D, OUT_DIM), full2d), pl.BlockSpec((1, OUT_DIM), full2d),
                  pl.BlockSpec((1, OUT_DIM), full2d), pl.BlockSpec((1, OUT_DIM), full2d),
                  pl.BlockSpec((OUT_DIM, FFN_DIM), full2d), pl.BlockSpec((1, FFN_DIM), full2d),
                  pl.BlockSpec((FFN_DIM, OUT_DIM), full2d), pl.BlockSpec((1, OUT_DIM), full2d),
                  pl.BlockSpec((1, OUT_DIM), full2d), pl.BlockSpec((1, OUT_DIM), full2d)],
        out_specs=pl.BlockSpec((ROW_BLK, OUT_DIM), lambda i: (i, 0)),
        out_shape=jax.ShapeDtypeStruct((rows, OUT_DIM), jnp.float32),
        compiler_params=pltpu.CompilerParams(dimension_semantics=("parallel",)),
    )(ctx2, x2,
      p["wo_t"].astype(jnp.bfloat16), p["bo"], p["ln1_g"], p["ln1_b"],
      p["w1_t"].astype(jnp.bfloat16), p["b1"],
      p["w2_t"].astype(jnp.bfloat16), p["b2"], p["ln2_g"], p["ln2_b"])

    return out2.reshape(B_, S_, OUT_DIM), attn


# ----------------------------- pure-JAX f32 reference ---------------------------------
def encoder_layer_ref(x, p):
    B_, S_, D = x.shape
    H = NUM_HEADS
    d = D // H
    x2 = x.reshape(B_ * S_, D)
    q = x2 @ p["wq_t"] + p["bq"]
    k = x2 @ p["wk_t"] + p["bk"]
    v = x2 @ p["wv_t"] + p["bv"]
    qh = q.reshape(B_ * H, S_, d)
    kh = k.reshape(B_ * H, S_, d)
    vh = v.reshape(B_ * H, S_, d)
    scores = jnp.einsum("bqd,bkd->bqk", qh, kh) * (float(d) ** -0.5)
    attn = jax.nn.softmax(scores, axis=-1)
    ctx = jnp.einsum("bqk,bkd->bqd", attn, vh).reshape(B_ * S_, D)

    def ln(y, g, b):
        mu = jnp.mean(y, -1, keepdims=True)
        var = jnp.mean((y - mu) ** 2, -1, keepdims=True)
        return (y - mu) / jnp.sqrt(var + EPS) * g + b

    a = ln(ctx @ p["wo_t"] + p["bo"] + x2, p["ln1_g"], p["ln1_b"])
    h = jnp.maximum(a @ p["w1_t"] + p["b1"], 0.0)
    f = ln(h @ p["w2_t"] + p["b2"] + a, p["ln2_g"], p["ln2_b"])
    return f.reshape(B_, S_, D), attn


# ----------------------------------- main ----------------------------------------------
def _init_params(key):
    ks = jax.random.split(key, 12)
    f32 = jnp.float32

    def w(k, shape, fan_in):
        return jax.random.normal(k, shape, f32) / jnp.sqrt(f32(fan_in))

    D, F = MODEL_DIM, FFN_DIM
    return {
        # attention projection weights, pre-transposed to (in, out)
        "wq_t": w(ks[0], (D, D), D), "bq": w(ks[1], (1, D), D),
        "wk_t": w(ks[2], (D, D), D), "bk": w(ks[3], (1, D), D),
        "wv_t": w(ks[4], (D, D), D), "bv": w(ks[5], (1, D), D),
        "wo_t": w(ks[6], (D, OUT_DIM), D), "bo": w(ks[7], (1, OUT_DIM), D),
        "ln1_g": jnp.ones((1, OUT_DIM), f32), "ln1_b": jnp.zeros((1, OUT_DIM), f32),
        # FFN: Conv1d(k=1) weights (out,in,1) squeezed + transposed to (in, out)
        "w1_t": w(ks[8], (OUT_DIM, F), OUT_DIM), "b1": w(ks[9], (1, F), OUT_DIM),
        "w2_t": w(ks[10], (F, OUT_DIM), F), "b2": w(ks[11], (1, OUT_DIM), F),
        "ln2_g": jnp.ones((1, OUT_DIM), f32), "ln2_b": jnp.zeros((1, OUT_DIM), f32),
    }
    # NOTE: nn.Dropout(p=0.0) in the reference is an identity and is therefore omitted.


if __name__ == "__main__":
    key = jax.random.PRNGKey(0)
    k_x, k_p = jax.random.split(key)
    x = jax.random.normal(k_x, (B, S, MODEL_DIM), jnp.float32)
    params = _init_params(k_p)

    out, attn = jax.jit(encoder_layer)(x, params)
    jax.block_until_ready((out, attn))

    out_ref, attn_ref = encoder_layer_ref(x, params)
    assert out.shape == (B, S, OUT_DIM) and attn.shape == (B * NUM_HEADS, S, S)
    assert jnp.allclose(out, out_ref, rtol=2e-2, atol=2e-2)
    assert jnp.allclose(attn, attn_ref, rtol=2e-2, atol=2e-2)
    print("KERNEL_OK")
</pallas_src>

<mosaic_0001>
module attributes {stable_mosaic.version = 11 : i64} {
  func.func @qkv_kernel(%arg0: i32, %arg1: memref<8x32xf32, #tpu.memory_space<vmem>>, %arg2: memref<32x96xbf16, #tpu.memory_space<vmem>>, %arg3: memref<1x96xf32, #tpu.memory_space<vmem>>, %arg4: memref<8x96xf32, #tpu.memory_space<vmem>>) attributes {dimension_semantics = [#tpu.dimension_semantics<parallel>], iteration_bounds = array<i64: 2>, scalar_prefetch = 0 : i64, scratch_operands = 0 : i64, tpu.core_type = #tpu.core_type<tc>, window_params = [{transform_indices = @transform_0, window_bounds = array<i64: 8, 32>}, {pipeline_mode = #tpu.pipeline_mode<synchronous>, transform_indices = @transform_1, window_bounds = array<i64: 32, 96>}, {pipeline_mode = #tpu.pipeline_mode<synchronous>, transform_indices = @transform_2, window_bounds = array<i64: 1, 96>}, {transform_indices = @transform_3, window_bounds = array<i64: 8, 96>}]} {
    %c0 = arith.constant 0 : index
    %c0_0 = arith.constant 0 : index
    %0 = vector.load %arg1[%c0, %c0_0] : memref<8x32xf32, #tpu.memory_space<vmem>>, vector<8x32xf32>
    %1 = arith.truncf %0 : vector<8x32xf32> to vector<8x32xbf16>
    %c0_1 = arith.constant 0 : index
    %c0_2 = arith.constant 0 : index
    %2 = vector.load %arg2[%c0_1, %c0_2] : memref<32x96xbf16, #tpu.memory_space<vmem>>, vector<32x96xbf16>
    %cst = arith.constant dense<0.000000e+00> : vector<8x96xf32>
    %3 = tpu.matmul %1, %2, %cst {dimension_numbers = #tpu.dot_dimension_numbers<[1], [0], [0], [1], [0, 0, 1, 1], [], []>} : vector<8x32xbf16>, vector<32x96xbf16>, vector<8x96xf32> -> vector<8x96xf32>
    %c0_3 = arith.constant 0 : index
    %c0_4 = arith.constant 0 : index
    %4 = vector.load %arg3[%c0_3, %c0_4] : memref<1x96xf32, #tpu.memory_space<vmem>>, vector<1x96xf32>
    %5 = vector.broadcast %4 : vector<1x96xf32> to vector<8x96xf32>
    %6 = arith.addf %3, %5 : vector<8x96xf32>
    %c0_5 = arith.constant 0 : index
    %c0_6 = arith.constant 0 : index
    %7 = vector.load %arg4[%c0_5, %c0_6] : memref<8x96xf32, #tpu.memory_space<vmem>>, vector<8x96xf32>
    tpu.vector_store %arg4[%c0_5, %c0_6], %6 {strides = array<i32>} : memref<8x96xf32, #tpu.memory_space<vmem>>, vector<8x96xf32>,
    return
  }
  func.func @transform_0(%arg0: i32) -> (i32, i32) {
    %c0_i32 = arith.constant 0 : i32
    %c0_i32_0 = arith.constant 0 : i32
    return %arg0, %c0_i32 : i32, i32
  }
  func.func @transform_1(%arg0: i32) -> (i32, i32) {
    %c0_i32 = arith.constant 0 : i32
    %c0_i32_0 = arith.constant 0 : i32
    %c0_i32_1 = arith.constant 0 : i32
    return %c0_i32, %c0_i32_0 : i32, i32
  }
  func.func @transform_2(%arg0: i32) -> (i32, i32) {
    %c0_i32 = arith.constant 0 : i32
    %c0_i32_0 = arith.constant 0 : i32
    %c0_i32_1 = arith.constant 0 : i32
    return %c0_i32, %c0_i32_0 : i32, i32
  }
  func.func @transform_3(%arg0: i32) -> (i32, i32) {
    %c0_i32 = arith.constant 0 : i32
    %c0_i32_0 = arith.constant 0 : i32
    return %arg0, %c0_i32 : i32, i32
  }
}

module attributes {stable_mosaic.version = 11 : i64} {
  func.func @sdpa_kernel(%arg0: i32, %arg1: memref<4x8x8xf32, #tpu.memory_space<vmem>>, %arg2: memref<4x8x8xf32, #tpu.memory_space<vmem>>, %arg3: memref<4x8x8xf32, #tpu.memory_space<vmem>>, %arg4: memref<4x8x8xf32, #tpu.memory_space<vmem>>, %arg5: memref<4x8x8xf32, #tpu.memory_space<vmem>>) attributes {dimension_semantics = [#tpu.dimension_semantics<parallel>], iteration_bounds = array<i64: 2>, scalar_prefetch = 0 : i64, scratch_operands = 0 : i64, tpu.core_type = #tpu.core_type<tc>, window_params = [{transform_indices = @transform_0, window_bounds = array<i64: 4, 8, 8>}, {transform_indices = @transform_1, window_bounds = array<i64: 4, 8, 8>}, {transform_indices = @transform_2, window_bounds = array<i64: 4, 8, 8>}, {transform_indices = @transform_3, window_bounds = array<i64: 4, 8, 8>}, {transform_indices = @transform_4, window_bounds = array<i64: 4, 8, 8>}]} {
    %c0 = arith.constant 0 : index
    %c0_0 = arith.constant 0 : index
    %c0_1 = arith.constant 0 : index
    %0 = vector.load %arg1[%c0, %c0_0, %c0_1] : memref<4x8x8xf32, #tpu.memory_space<vmem>>, vector<4x8x8xf32>
    %1 = arith.truncf %0 : vector<4x8x8xf32> to vector<4x8x8xbf16>
    %c0_2 = arith.constant 0 : index
    %c0_3 = arith.constant 0 : index
    %c0_4 = arith.constant 0 : index
    %2 = vector.load %arg2[%c0_2, %c0_3, %c0_4] : memref<4x8x8xf32, #tpu.memory_space<vmem>>, vector<4x8x8xf32>
    %3 = arith.truncf %2 : vector<4x8x8xf32> to vector<4x8x8xbf16>
    %c0_5 = arith.constant 0 : index
    %c0_6 = arith.constant 0 : index
    %c0_7 = arith.constant 0 : index
    %4 = vector.load %arg3[%c0_5, %c0_6, %c0_7] : memref<4x8x8xf32, #tpu.memory_space<vmem>>, vector<4x8x8xf32>
    %5 = arith.truncf %4 : vector<4x8x8xf32> to vector<4x8x8xbf16>
    "tpu.trace_start"() <{level = 10 : i32, message = "hqd,hkd->hqk"}> : () -> ()
    %cst = arith.constant dense<0.000000e+00> : vector<4x8x8xf32>
    %6 = tpu.matmul %1, %3, %cst {dimension_numbers = #tpu.dot_dimension_numbers<[2], [2], [1], [1], [0, 0, 0, 1, 1, 1], [0], [0]>} : vector<4x8x8xbf16>, vector<4x8x8xbf16>, vector<4x8x8xf32> -> vector<4x8x8xf32>
    "tpu.trace_stop"() : () -> ()
    %cst_8 = arith.constant dense<0xFF800000> : vector<4x8xf32>
    %7 = vector.multi_reduction <maximumf>, %6, %cst_8 [2] : vector<4x8x8xf32> to vector<4x8xf32>
    %8 = vector.shape_cast %7 : vector<4x8xf32> to vector<4x8x1xf32>
    %9 = vector.broadcast %8 : vector<4x8x1xf32> to vector<4x8x8xf32>
    %10 = arith.subf %6, %9 : vector<4x8x8xf32>
    %11 = math.exp %10 : vector<4x8x8xf32>
    %cst_9 = arith.constant dense<0.000000e+00> : vector<4x8xf32>
    %12 = vector.multi_reduction <add>, %11, %cst_9 [2] : vector<4x8x8xf32> to vector<4x8xf32>
    %13 = vector.shape_cast %12 : vector<4x8xf32> to vector<4x8x1xf32>
    %14 = tpu.reciprocal %13 {approx = true} : vector<4x8x1xf32> -> vector<4x8x1xf32>
    %15 = vector.broadcast %14 : vector<4x8x1xf32> to vector<4x8x8xf32>
    %16 = arith.mulf %11, %15 : vector<4x8x8xf32>
    %c0_10 = arith.constant 0 : index
    %c0_11 = arith.constant 0 : index
    %c0_12 = arith.constant 0 : index
    %17 = vector.load %arg5[%c0_10, %c0_11, %c0_12] : memref<4x8x8xf32, #tpu.memory_space<vmem>>, vector<4x8x8xf32>
    tpu.vector_store %arg5[%c0_10, %c0_11, %c0_12], %16 {strides = array<i32>} : memref<4x8x8xf32, #tpu.memory_space<vmem>>, vector<4x8x8xf32>,
    %18 = arith.truncf %16 : vector<4x8x8xf32> to vector<4x8x8xbf16>
    "tpu.trace_start"() <{level = 10 : i32, message = "hqk,hkd->hqd"}> : () -> ()
    %cst_13 = arith.constant dense<0.000000e+00> : vector<4x8x8xf32>
    %19 = tpu.matmul %18, %5, %cst_13 {dimension_numbers = #tpu.dot_dimension_numbers<[2], [1], [1], [2], [0, 0, 0, 1, 1, 2], [0], [0]>} : vector<4x8x8xbf16>, vector<4x8x8xbf16>, vector<4x8x8xf32> -> vector<4x8x8xf32>
    "tpu.trace_stop"() : () -> ()
    %c0_14 = arith.constant 0 : index
    %c0_15 = arith.constant 0 : index
    %c0_16 = arith.constant 0 : index
    %20 = vector.load %arg4[%c0_14, %c0_15, %c0_16] : memref<4x8x8xf32, #tpu.memory_space<vmem>>, vector<4x8x8xf32>
    tpu.vector_store %arg4[%c0_14, %c0_15, %c0_16], %19 {strides = array<i32>} : memref<4x8x8xf32, #tpu.memory_space<vmem>>, vector<4x8x8xf32>,
    return
  }
  func.func @transform_0(%arg0: i32) -> (i32, i32, i32) {
    %c0_i32 = arith.constant 0 : i32
    %c0_i32_0 = arith.constant 0 : i32
    %c0_i32_1 = arith.constant 0 : i32
    return %arg0, %c0_i32, %c0_i32_0 : i32, i32, i32
  }
  func.func @transform_1(%arg0: i32) -> (i32, i32, i32) {
    %c0_i32 = arith.constant 0 : i32
    %c0_i32_0 = arith.constant 0 : i32
    %c0_i32_1 = arith.constant 0 : i32
    return %arg0, %c0_i32, %c0_i32_0 : i32, i32, i32
  }
  func.func @transform_2(%arg0: i32) -> (i32, i32, i32) {
    %c0_i32 = arith.constant 0 : i32
    %c0_i32_0 = arith.constant 0 : i32
    %c0_i32_1 = arith.constant 0 : i32
    return %arg0, %c0_i32, %c0_i32_0 : i32, i32, i32
  }
  func.func @transform_3(%arg0: i32) -> (i32, i32, i32) {
    %c0_i32 = arith.constant 0 : i32
    %c0_i32_0 = arith.constant 0 : i32
    %c0_i32_1 = arith.constant 0 : i32
    return %arg0, %c0_i32, %c0_i32_0 : i32, i32, i32
  }
  func.func @transform_4(%arg0: i32) -> (i32, i32, i32) {
    %c0_i32 = arith.constant 0 : i32
    %c0_i32_0 = arith.constant 0 : i32
    %c0_i32_1 = arith.constant 0 : i32
    return %arg0, %c0_i32, %c0_i32_0 : i32, i32, i32
  }
}

module attributes {stable_mosaic.version = 11 : i64} {
  func.func @tail_kernel(%arg0: i32, %arg1: memref<8x32xf32, #tpu.memory_space<vmem>>, %arg2: memref<8x32xf32, #tpu.memory_space<vmem>>, %arg3: memref<32x32xbf16, #tpu.memory_space<vmem>>, %arg4: memref<1x32xf32, #tpu.memory_space<vmem>>, %arg5: memref<1x32xf32, #tpu.memory_space<vmem>>, %arg6: memref<1x32xf32, #tpu.memory_space<vmem>>, %arg7: memref<32x64xbf16, #tpu.memory_space<vmem>>, %arg8: memref<1x64xf32, #tpu.memory_space<vmem>>, %arg9: memref<64x32xbf16, #tpu.memory_space<vmem>>, %arg10: memref<1x32xf32, #tpu.memory_space<vmem>>, %arg11: memref<1x32xf32, #tpu.memory_space<vmem>>, %arg12: memref<1x32xf32, #tpu.memory_space<vmem>>, %arg13: memref<8x32xf32, #tpu.memory_space<vmem>>) attributes {dimension_semantics = [#tpu.dimension_semantics<parallel>], iteration_bounds = array<i64: 2>, scalar_prefetch = 0 : i64, scratch_operands = 0 : i64, tpu.core_type = #tpu.core_type<tc>, window_params = [{transform_indices = @transform_0, window_bounds = array<i64: 8, 32>}, {transform_indices = @transform_1, window_bounds = array<i64: 8, 32>}, {pipeline_mode = #tpu.pipeline_mode<synchronous>, transform_indices = @transform_2, window_bounds = array<i64: 32, 32>}, {pipeline_mode = #tpu.pipeline_mode<synchronous>, transform_indices = @transform_3, window_bounds = array<i64: 1, 32>}, {pipeline_mode = #tpu.pipeline_mode<synchronous>, transform_indices = @transform_4, window_bounds = array<i64: 1, 32>}, {pipeline_mode = #tpu.pipeline_mode<synchronous>, transform_indices = @transform_5, window_bounds = array<i64: 1, 32>}, {pipeline_mode = #tpu.pipeline_mode<synchronous>, transform_indices = @transform_6, window_bounds = array<i64: 32, 64>}, {pipeline_mode = #tpu.pipeline_mode<synchronous>, transform_indices = @transform_7, window_bounds = array<i64: 1, 64>}, {pipeline_mode = #tpu.pipeline_mode<synchronous>, transform_indices = @transform_8, window_bounds = array<i64: 64, 32>}, {pipeline_mode = #tpu.pipeline_mode<synchronous>, transform_indices = @transform_9, window_bounds = array<i64: 1, 32>}, {pipeline_mode = #tpu.pipeline_mode<synchronous>, transform_indices = @transform_10, window_bounds = array<i64: 1, 32>}, {pipeline_mode = #tpu.pipeline_mode<synchronous>, transform_indices = @transform_11, window_bounds = array<i64: 1, 32>}, {transform_indices = @transform_12, window_bounds = array<i64: 8, 32>}]} {
    %c0 = arith.constant 0 : index
    %c0_0 = arith.constant 0 : index
    %0 = vector.load %arg1[%c0, %c0_0] : memref<8x32xf32, #tpu.memory_space<vmem>>, vector<8x32xf32>
    %1 = arith.truncf %0 : vector<8x32xf32> to vector<8x32xbf16>
    %c0_1 = arith.constant 0 : index
    %c0_2 = arith.constant 0 : index
    %2 = vector.load %arg3[%c0_1, %c0_2] : memref<32x32xbf16, #tpu.memory_space<vmem>>, vector<32x32xbf16>
    %cst = arith.constant dense<0.000000e+00> : vector<8x32xf32>
    %3 = tpu.matmul %1, %2, %cst {dimension_numbers = #tpu.dot_dimension_numbers<[1], [0], [0], [1], [0, 0, 1, 1], [], []>} : vector<8x32xbf16>, vector<32x32xbf16>, vector<8x32xf32> -> vector<8x32xf32>
    %c0_3 = arith.constant 0 : index
    %c0_4 = arith.constant 0 : index
    %4 = vector.load %arg4[%c0_3, %c0_4] : memref<1x32xf32, #tpu.memory_space<vmem>>, vector<1x32xf32>
    %5 = vector.broadcast %4 : vector<1x32xf32> to vector<8x32xf32>
    %6 = arith.addf %3, %5 : vector<8x32xf32>
    %c0_5 = arith.constant 0 : index
    %c0_6 = arith.constant 0 : index
    %7 = vector.load %arg2[%c0_5, %c0_6] : memref<8x32xf32, #tpu.memory_space<vmem>>, vector<8x32xf32>
    %8 = arith.addf %6, %7 : vector<8x32xf32>
    %c0_7 = arith.constant 0 : index
    %c0_8 = arith.constant 0 : index
    %9 = vector.load %arg5[%c0_7, %c0_8] : memref<1x32xf32, #tpu.memory_space<vmem>>, vector<1x32xf32>
    %c0_9 = arith.constant 0 : index
    %c0_10 = arith.constant 0 : index
    %10 = vector.load %arg6[%c0_9, %c0_10] : memref<1x32xf32, #tpu.memory_space<vmem>>, vector<1x32xf32>
    %cst_11 = arith.constant dense<0.000000e+00> : vector<8xf32>
    %11 = vector.multi_reduction <add>, %8, %cst_11 [1] : vector<8x32xf32> to vector<8xf32>
    %12 = vector.shape_cast %11 : vector<8xf32> to vector<8x1xf32>
    %cst_12 = arith.constant 3.200000e+01 : f32
    %13 = vector.broadcast %cst_12 : f32 to vector<8x1xf32>
    %14 = arith.divf %12, %13 : vector<8x1xf32>
    %15 = vector.broadcast %14 : vector<8x1xf32> to vector<8x32xf32>
    %16 = arith.subf %8, %15 : vector<8x32xf32>
    %17 = arith.mulf %16, %16 : vector<8x32xf32>
    %cst_13 = arith.constant dense<0.000000e+00> : vector<8xf32>
    %18 = vector.multi_reduction <add>, %17, %cst_13 [1] : vector<8x32xf32> to vector<8xf32>
    %19 = vector.shape_cast %18 : vector<8xf32> to vector<8x1xf32>
    %cst_14 = arith.constant 3.200000e+01 : f32
    %20 = vector.broadcast %cst_14 : f32 to vector<8x1xf32>
    %21 = arith.divf %19, %20 : vector<8x1xf32>
    %22 = vector.broadcast %14 : vector<8x1xf32> to vector<8x32xf32>
    %23 = arith.subf %8, %22 : vector<8x32xf32>
    %cst_15 = arith.constant 9.99999974E-6 : f32
    %24 = vector.broadcast %cst_15 : f32 to vector<8x1xf32>
    %25 = arith.addf %21, %24 : vector<8x1xf32>
    %26 = math.rsqrt %25 : vector<8x1xf32>
    %27 = vector.broadcast %26 : vector<8x1xf32> to vector<8x32xf32>
    %28 = arith.mulf %23, %27 : vector<8x32xf32>
    %29 = vector.broadcast %9 : vector<1x32xf32> to vector<8x32xf32>
    %30 = arith.mulf %28, %29 : vector<8x32xf32>
    %31 = vector.broadcast %10 : vector<1x32xf32> to vector<8x32xf32>
    %32 = arith.addf %30, %31 : vector<8x32xf32>
    %33 = arith.truncf %32 : vector<8x32xf32> to vector<8x32xbf16>
    %c0_16 = arith.constant 0 : index
    %c0_17 = arith.constant 0 : index
    %34 = vector.load %arg7[%c0_16, %c0_17] : memref<32x64xbf16, #tpu.memory_space<vmem>>, vector<32x64xbf16>
    %cst_18 = arith.constant dense<0.000000e+00> : vector<8x64xf32>
    %35 = tpu.matmul %33, %34, %cst_18 {dimension_numbers = #tpu.dot_dimension_numbers<[1], [0], [0], [1], [0, 0, 1, 1], [], []>} : vector<8x32xbf16>, vector<32x64xbf16>, vector<8x64xf32> -> vector<8x64xf32>
    %c0_19 = arith.constant 0 : index
    %c0_20 = arith.constant 0 : index
    %36 = vector.load %arg8[%c0_19, %c0_20] : memref<1x64xf32, #tpu.memory_space<vmem>>, vector<1x64xf32>
    %37 = vector.broadcast %36 : vector<1x64xf32> to vector<8x64xf32>
    %38 = arith.addf %35, %37 : vector<8x64xf32>
    %cst_21 = arith.constant 0.000000e+00 : f32
    %39 = vector.broadcast %cst_21 : f32 to vector<8x64xf32>
    %40 = arith.maximumf %38, %39 : vector<8x64xf32>
    %41 = arith.truncf %40 : vector<8x64xf32> to vector<8x64xbf16>
    %c0_22 = arith.constant 0 : index
    %c0_23 = arith.constant 0 : index
    %42 = vector.load %arg9[%c0_22, %c0_23] : memref<64x32xbf16, #tpu.memory_space<vmem>>, vector<64x32xbf16>
    %cst_24 = arith.constant dense<0.000000e+00> : vector<8x32xf32>
    %43 = tpu.matmul %41, %42, %cst_24 {dimension_numbers = #tpu.dot_dimension_numbers<[1], [0], [0], [1], [0, 0, 1, 1], [], []>} : vector<8x64xbf16>, vector<64x32xbf16>, vector<8x32xf32> -> vector<8x32xf32>
    %c0_25 = arith.constant 0 : index
    %c0_26 = arith.constant 0 : index
    %44 = vector.load %arg10[%c0_25, %c0_26] : memref<1x32xf32, #tpu.memory_space<vmem>>, vector<1x32xf32>
    %45 = vector.broadcast %44 : vector<1x32xf32> to vector<8x32xf32>
    %46 = arith.addf %43, %45 : vector<8x32xf32>
    %47 = arith.addf %46, %32 : vector<8x32xf32>
    %c0_27 = arith.constant 0 : index
    %c0_28 = arith.constant 0 : index
    %48 = vector.load %arg11[%c0_27, %c0_28] : memref<1x32xf32, #tpu.memory_space<vmem>>, vector<1x32xf32>
    %c0_29 = arith.constant 0 : index
    %c0_30 = arith.constant 0 : index
    %49 = vector.load %arg12[%c0_29, %c0_30] : memref<1x32xf32, #tpu.memory_space<vmem>>, vector<1x32xf32>
    %cst_31 = arith.constant dense<0.000000e+00> : vector<8xf32>
    %50 = vector.multi_reduction <add>, %47, %cst_31 [1] : vector<8x32xf32> to vector<8xf32>
    %51 = vector.shape_cast %50 : vector<8xf32> to vector<8x1xf32>
    %cst_32 = arith.constant 3.200000e+01 : f32
    %52 = vector.broadcast %cst_32 : f32 to vector<8x1xf32>
    %53 = arith.divf %51, %52 : vector<8x1xf32>
    %54 = vector.broadcast %53 : vector<8x1xf32> to vector<8x32xf32>
    %55 = arith.subf %47, %54 : vector<8x32xf32>
    %56 = arith.mulf %55, %55 : vector<8x32xf32>
    %cst_33 = arith.constant dense<0.000000e+00> : vector<8xf32>
    %57 = vector.multi_reduction <add>, %56, %cst_33 [1] : vector<8x32xf32> to vector<8xf32>
    %58 = vector.shape_cast %57 : vector<8xf32> to vector<8x1xf32>
    %cst_34 = arith.constant 3.200000e+01 : f32
    %59 = vector.broadcast %cst_34 : f32 to vector<8x1xf32>
    %60 = arith.divf %58, %59 : vector<8x1xf32>
    %61 = vector.broadcast %53 : vector<8x1xf32> to vector<8x32xf32>
    %62 = arith.subf %47, %61 : vector<8x32xf32>
    %cst_35 = arith.constant 9.99999974E-6 : f32
    %63 = vector.broadcast %cst_35 : f32 to vector<8x1xf32>
    %64 = arith.addf %60, %63 : vector<8x1xf32>
    %65 = math.rsqrt %64 : vector<8x1xf32>
    %66 = vector.broadcast %65 : vector<8x1xf32> to vector<8x32xf32>
    %67 = arith.mulf %62, %66 : vector<8x32xf32>
    %68 = vector.broadcast %48 : vector<1x32xf32> to vector<8x32xf32>
    %69 = arith.mulf %67, %68 : vector<8x32xf32>
    %70 = vector.broadcast %49 : vector<1x32xf32> to vector<8x32xf32>
    %71 = arith.addf %69, %70 : vector<8x32xf32>
    %c0_36 = arith.constant 0 : index
    %c0_37 = arith.constant 0 : index
    %72 = vector.load %arg13[%c0_36, %c0_37] : memref<8x32xf32, #tpu.memory_space<vmem>>, vector<8x32xf32>
    tpu.vector_store %arg13[%c0_36, %c0_37], %71 {strides = array<i32>} : memref<8x32xf32, #tpu.memory_space<vmem>>, vector<8x32xf32>,
    return
  }
  func.func @transform_0(%arg0: i32) -> (i32, i32) {
    %c0_i32 = arith.constant 0 : i32
    %c0_i32_0 = arith.constant 0 : i32
    return %arg0, %c0_i32 : i32, i32
  }
  func.func @transform_1(%arg0: i32) -> (i32, i32) {
    %c0_i32 = arith.constant 0 : i32
    %c0_i32_0 = arith.constant 0 : i32
    return %arg0, %c0_i32 : i32, i32
  }
  func.func @transform_2(%arg0: i32) -> (i32, i32) {
    %c0_i32 = arith.constant 0 : i32
    %c0_i32_0 = arith.constant 0 : i32
    %c0_i32_1 = arith.constant 0 : i32
    return %c0_i32, %c0_i32_0 : i32, i32
  }
  func.func @transform_3(%arg0: i32) -> (i32, i32) {
    %c0_i32 = arith.constant 0 : i32
    %c0_i32_0 = arith.constant 0 : i32
    %c0_i32_1 = arith.constant 0 : i32
    return %c0_i32, %c0_i32_0 : i32, i32
  }
  func.func @transform_4(%arg0: i32) -> (i32, i32) {
    %c0_i32 = arith.constant 0 : i32
    %c0_i32_0 = arith.constant 0 : i32
    %c0_i32_1 = arith.constant 0 : i32
    return %c0_i32, %c0_i32_0 : i32, i32
  }
  func.func @transform_5(%arg0: i32) -> (i32, i32) {
    %c0_i32 = arith.constant 0 : i32
    %c0_i32_0 = arith.constant 0 : i32
    %c0_i32_1 = arith.constant 0 : i32
    return %c0_i32, %c0_i32_0 : i32, i32
  }
  func.func @transform_6(%arg0: i32) -> (i32, i32) {
    %c0_i32 = arith.constant 0 : i32
    %c0_i32_0 = arith.constant 0 : i32
    %c0_i32_1 = arith.constant 0 : i32
    return %c0_i32, %c0_i32_0 : i32, i32
  }
  func.func @transform_7(%arg0: i32) -> (i32, i32) {
    %c0_i32 = arith.constant 0 : i32
    %c0_i32_0 = arith.constant 0 : i32
    %c0_i32_1 = arith.constant 0 : i32
    return %c0_i32, %c0_i32_0 : i32, i32
  }
  func.func @transform_8(%arg0: i32) -> (i32, i32) {
    %c0_i32 = arith.constant 0 : i32
    %c0_i32_0 = arith.constant 0 : i32
    %c0_i32_1 = arith.constant 0 : i32
    return %c0_i32, %c0_i32_0 : i32, i32
  }
  func.func @transform_9(%arg0: i32) -> (i32, i32) {
    %c0_i32 = arith.constant 0 : i32
    %c0_i32_0 = arith.constant 0 : i32
    %c0_i32_1 = arith.constant 0 : i32
    return %c0_i32, %c0_i32_0 : i32, i32
  }
  func.func @transform_10(%arg0: i32) -> (i32, i32) {
    %c0_i32 = arith.constant 0 : i32
    %c0_i32_0 = arith.constant 0 : i32
    %c0_i32_1 = arith.constant 0 : i32
    return %c0_i32, %c0_i32_0 : i32, i32
  }
  func.func @transform_11(%arg0: i32) -> (i32, i32) {
    %c0_i32 = arith.constant 0 : i32
    %c0_i32_0 = arith.constant 0 : i32
    %c0_i32_1 = arith.constant 0 : i32
    return %c0_i32, %c0_i32_0 : i32, i32
  }
  func.func @transform_12(%arg0: i32) -> (i32, i32) {
    %c0_i32 = arith.constant 0 : i32
    %c0_i32_0 = arith.constant 0 : i32
    return %arg0, %c0_i32 : i32, i32
  }
}

</mosaic_0001>

<llo_original>
// kernel: encoder_layer.5
$region0: #{encoder_layer.5}
  #allocation0 [shape = 'u32[]', space=smem, size = 0x4, offset = 0x4, fixed_abs, tag = 'smem constant byte address 0x4 - core index']
  #allocation1 [shape = 'u32[144,128]{1,0:T(1,128)}', space=vmem, size = 0x12000, scoped, tag = 'internal scratch']
  %s0 = inlined_call_operand.vmem [shape: f32[16,32], index: 0, kind: input, shape index: {}]
  %s1 = inlined_call_operand.vmem [shape: f32[16,32], index: 1, kind: input, shape index: {}]
  %s2 = inlined_call_operand.vmem [shape: bf16[32,32], index: 2, kind: input, shape index: {}]
  %s3 = inlined_call_operand.vmem [shape: f32[1,32], index: 3, kind: input, shape index: {}]
  %s4 = inlined_call_operand.vmem [shape: f32[1,32], index: 4, kind: input, shape index: {}]
  %s5 = inlined_call_operand.vmem [shape: f32[1,32], index: 5, kind: input, shape index: {}]
  %s6 = inlined_call_operand.vmem [shape: bf16[32,64], index: 6, kind: input, shape index: {}]
  %s7 = inlined_call_operand.vmem [shape: f32[1,64], index: 7, kind: input, shape index: {}]
  %s8 = inlined_call_operand.vmem [shape: bf16[64,32], index: 8, kind: input, shape index: {}]
  %s9 = inlined_call_operand.vmem [shape: f32[1,32], index: 9, kind: input, shape index: {}]
  %s10 = inlined_call_operand.vmem [shape: f32[1,32], index: 10, kind: input, shape index: {}]
  %s11 = inlined_call_operand.vmem [shape: f32[1,32], index: 11, kind: input, shape index: {}]
  %s12 = inlined_call_operand.hbm [shape: f32[16,32], index: 12, kind: output, shape index: {}]
  %s13 = sld [smem:[#allocation0]]
  $region81: #{encoder_layer.5} parent=0
    _
  %s15 = ssub.s32 1, %s13
  %s16 = scalar_select 0, %s15, %s13
  $region1: #{encoder_layer.5} parent=0
    #allocation2 [shape = 'u8[8192]{0}', space=vmem, size = 0x2000, scoped, tag = 'output window, operand 0']
    #allocation3 [shape = 's32[2]{0}', space=sflag, size = 0x8, scoped, tag = 'scoped memory for encoder_layer.5']
    %17 = vsyncpa [#allocation3], 0
    %s18 = scalar_lea.sflag [#allocation3], 1
    %19 = vsyncpa %s18, 0
    loop: start=0, step=1, limit=4
    $region2: #{encoder_layer.5} parent=1 // loop_pre_header
      _
    $region3: #{encoder_layer.5} parent=1 // loop_header
      %s21 = sphi 0, %s25
      %p22 = scmp.ge.s32.totalorder %s21, 4
      %s31 = sphi 0, %s33
      %s34 = sphi 0, %s31
      %s35 = sphi 0, %s34
      %s51 = sphi 0, %s35
      %s57 = sphi 0, %s59
      %s60 = sphi 0, %s57
      %s61 = sphi 0, %s60
      %s77 = sphi 0, %s61
      %s81 = sphi 0, %s81
      %s83 = sphi 0, %s81
      %s84 = sphi 0, %s83
      %s98 = sphi 0, %s84
      %s102 = sphi 0, %s102
      %s104 = sphi 0, %s102
      %s105 = sphi 0, %s104
      %s119 = sphi 0, %s105
      %s123 = sphi 0, %s123
      %s125 = sphi 0, %s123
      %s126 = sphi 0, %s125
      %s140 = sphi 0, %s126
      %s144 = sphi 0, %s144
      %s146 = sphi 0, %s144
      %s147 = sphi 0, %s146
      %s161 = sphi 0, %s147
      %s165 = sphi 0, %s165
      %s167 = sphi 0, %s165
      %s168 = sphi 0, %s167
      %s182 = sphi 0, %s168
      %s186 = sphi 0, %s186
      %s188 = sphi 0, %s186
      %s189 = sphi 0, %s188
      %s203 = sphi 0, %s189
      %s207 = sphi 0, %s207
      %s209 = sphi 0, %s207
      %s210 = sphi 0, %s209
      %s224 = sphi 0, %s210
      %s228 = sphi 0, %s228
      %s230 = sphi 0, %s228
      %s231 = sphi 0, %s230
      %s245 = sphi 0, %s231
      %s249 = sphi 0, %s249
      %s251 = sphi 0, %s249
      %s252 = sphi 0, %s251
      %s266 = sphi 0, %s252
      %s270 = sphi 0, %s270
      %s272 = sphi 0, %s270
      %s273 = sphi 0, %s272
      %s287 = sphi 0, %s273
      %s293 = sphi 0, %s295
      %s296 = sphi 0, %s293
      %s297 = sphi 0, %s296
      %s313 = sphi 0, %s297
    $region4: #{encoder_layer.5} parent=1 // loop_header_branch
      %24 = sbr.rel (%p22) target = $region8
    $region5: #{encoder_layer.5} parent=1 // loop_body
      %s26 = ssub.s32 %s21, 1
      %s27 = ssub.s32 %s21, 2
      %s28 = sadd.s32 %s21, 1
      %s29 = ssub.s32 %s21, %s28
      %p30 = scmp.eq.s32.totalorder %s29, 0
      %s32 = sadd.s32 %s31, 1
      %s33 = scalar_select %p30, %s31, %s32
      %p36 = pneg %p30
      %p37 = scmp.eq.s32.totalorder %s21, 1
      %p38 = por %p36, %p37
      %p39 = scmp.ne.s32.totalorder %s31, %s34
      %p40 = scmp.eq.s32.totalorder %s21, 0
      %p41 = por %p39, %p40
      %p42 = scmp.ne.s32.totalorder %s31, %s34
      %p43 = scmp.eq.s32.totalorder %s26, 1
      %p44 = por %p42, %p43
      %p45 = scmp.ne.s32.totalorder %s34, %s35
      %p46 = scmp.eq.s32.totalorder %s26, 0
      %p47 = por %p45, %p46
      %p48 = scmp.ne.s32.totalorder %s34, %s35
      %p49 = scmp.eq.s32.totalorder %s27, 1
      %p50 = por %p48, %p49
      %p52 = scmp.ne.s32.totalorder %s35, %s51
      %p53 = scmp.eq.s32.totalorder %s27, 0
      %p54 = por %p52, %p53
      %s55 = ssub.s32 %s21, %s28
      %p56 = scmp.eq.s32.totalorder %s55, 0
      %s58 = sadd.s32 %s57, 1
      %s59 = scalar_select %p56, %s57, %s58
      %p62 = pneg %p56
      %p63 = scmp.eq.s32.totalorder %s21, 1
      %p64 = por %p62, %p63
      %p65 = scmp.ne.s32.totalorder %s57, %s60
      %p66 = scmp.eq.s32.totalorder %s21, 0
      %p67 = por %p65, %p66
      %p68 = scmp.ne.s32.totalorder %s57, %s60
      %p69 = scmp.eq.s32.totalorder %s26, 1
      %p70 = por %p68, %p69
      %p71 = scmp.ne.s32.totalorder %s60, %s61
      %p72 = scmp.eq.s32.totalorder %s26, 0
      %p73 = por %p71, %p72
      %p74 = scmp.ne.s32.totalorder %s60, %s61
      %p75 = scmp.eq.s32.totalorder %s27, 1
      %p76 = por %p74, %p75
      %p78 = scmp.ne.s32.totalorder %s61, %s77
      %p79 = scmp.eq.s32.totalorder %s27, 0
      %p80 = por %p78, %p79
      %s82 = sadd.s32 %s81, 1
      %p85 = scmp.eq.s32.totalorder %s21, 1
      %p86 = scmp.ne.s32.totalorder %s81, %s83
      %p87 = scmp.eq.s32.totalorder %s21, 0
      %p88 = por %p86, %p87
      %p89 = scmp.ne.s32.totalorder %s81, %s83
      %p90 = scmp.eq.s32.totalorder %s26, 1
      %p91 = por %p89, %p90
      %p92 = scmp.ne.s32.totalorder %s83, %s84
      %p93 = scmp.eq.s32.totalorder %s26, 0
      %p94 = por %p92, %p93
      %p95 = scmp.ne.s32.totalorder %s83, %s84
      %p96 = scmp.eq.s32.totalorder %s27, 1
      %p97 = por %p95, %p96
      %p99 = scmp.ne.s32.totalorder %s84, %s98
      %p100 = scmp.eq.s32.totalorder %s27, 0
      %p101 = por %p99, %p100
      %s103 = sadd.s32 %s102, 1
      %p106 = scmp.eq.s32.totalorder %s21, 1
      %p107 = scmp.ne.s32.totalorder %s102, %s104
      %p108 = scmp.eq.s32.totalorder %s21, 0
      %p109 = por %p107, %p108
      %p110 = scmp.ne.s32.totalorder %s102, %s104
      %p111 = scmp.eq.s32.totalorder %s26, 1
      %p112 = por %p110, %p111
      %p113 = scmp.ne.s32.totalorder %s104, %s105
      %p114 = scmp.eq.s32.totalorder %s26, 0
      %p115 = por %p113, %p114
      %p116 = scmp.ne.s32.totalorder %s104, %s105
      %p117 = scmp.eq.s32.totalorder %s27, 1
      %p118 = por %p116, %p117
      %p120 = scmp.ne.s32.totalorder %s105, %s119
      %p121 = scmp.eq.s32.totalorder %s27, 0
      %p122 = por %p120, %p121
      %s124 = sadd.s32 %s123, 1
      %p127 = scmp.eq.s32.totalorder %s21, 1
      %p128 = scmp.ne.s32.totalorder %s123, %s125
      %p129 = scmp.eq.s32.totalorder %s21, 0
      %p130 = por %p128, %p129
      %p131 = scmp.ne.s32.totalorder %s123, %s125
      %p132 = scmp.eq.s32.totalorder %s26, 1
      %p133 = por %p131, %p132
      %p134 = scmp.ne.s32.totalorder %s125, %s126
      %p135 = scmp.eq.s32.totalorder %s26, 0
      %p136 = por %p134, %p135
      %p137 = scmp.ne.s32.totalorder %s125, %s126
      %p138 = scmp.eq.s32.totalorder %s27, 1
      %p139 = por %p137, %p138
      %p141 = scmp.ne.s32.totalorder %s126, %s140
      %p142 = scmp.eq.s32.totalorder %s27, 0
      %p143 = por %p141, %p142
      %s145 = sadd.s32 %s144, 1
      %p148 = scmp.eq.s32.totalorder %s21, 1
      %p149 = scmp.ne.s32.totalorder %s144, %s146
      %p150 = scmp.eq.s32.totalorder %s21, 0
      %p151 = por %p149, %p150
      %p152 = scmp.ne.s32.totalorder %s144, %s146
      %p153 = scmp.eq.s32.totalorder %s26, 1
      %p154 = por %p152, %p153
      %p155 = scmp.ne.s32.totalorder %s146, %s147
      %p156 = scmp.eq.s32.totalorder %s26, 0
      %p157 = por %p155, %p156
      %p158 = scmp.ne.s32.totalorder %s146, %s147
      %p159 = scmp.eq.s32.totalorder %s27, 1
      %p160 = por %p158, %p159
      %p162 = scmp.ne.s32.totalorder %s147, %s161
      %p163 = scmp.eq.s32.totalorder %s27, 0
      %p164 = por %p162, %p163
      %s166 = sadd.s32 %s165, 1
      %p169 = scmp.eq.s32.totalorder %s21, 1
      %p170 = scmp.ne.s32.totalorder %s165, %s167
      %p171 = scmp.eq.s32.totalorder %s21, 0
      %p172 = por %p170, %p171
      %p173 = scmp.ne.s32.totalorder %s165, %s167
      %p174 = scmp.eq.s32.totalorder %s26, 1
      %p175 = por %p173, %p174
      %p176 = scmp.ne.s32.totalorder %s167, %s168
      %p177 = scmp.eq.s32.totalorder %s26, 0
      %p178 = por %p176, %p177
      %p179 = scmp.ne.s32.totalorder %s167, %s168
      %p180 = scmp.eq.s32.totalorder %s27, 1
      %p181 = por %p179, %p180
      %p183 = scmp.ne.s32.totalorder %s168, %s182
      %p184 = scmp.eq.s32.totalorder %s27, 0
      %p185 = por %p183, %p184
      %s187 = sadd.s32 %s186, 1
      %p190 = scmp.eq.s32.totalorder %s21, 1
      %p191 = scmp.ne.s32.totalorder %s186, %s188
      %p192 = scmp.eq.s32.totalorder %s21, 0
      %p193 = por %p191, %p192
      %p194 = scmp.ne.s32.totalorder %s186, %s188
      %p195 = scmp.eq.s32.totalorder %s26, 1
      %p196 = por %p194, %p195
      %p197 = scmp.ne.s32.totalorder %s188, %s189
      %p198 = scmp.eq.s32.totalorder %s26, 0
      %p199 = por %p197, %p198
      %p200 = scmp.ne.s32.totalorder %s188, %s189
      %p201 = scmp.eq.s32.totalorder %s27, 1
      %p202 = por %p200, %p201
      %p204 = scmp.ne.s32.totalorder %s189, %s203
      %p205 = scmp.eq.s32.totalorder %s27, 0
      %p206 = por %p204, %p205
      %s208 = sadd.s32 %s207, 1
      %p211 = scmp.eq.s32.totalorder %s21, 1
      %p212 = scmp.ne.s32.totalorder %s207, %s209
      %p213 = scmp.eq.s32.totalorder %s21, 0
      %p214 = por %p212, %p213
      %p215 = scmp.ne.s32.totalorder %s207, %s209
      %p216 = scmp.eq.s32.totalorder %s26, 1
      %p217 = por %p215, %p216
      %p218 = scmp.ne.s32.totalorder %s209, %s210
      %p219 = scmp.eq.s32.totalorder %s26, 0
      %p220 = por %p218, %p219
      %p221 = scmp.ne.s32.totalorder %s209, %s210
      %p222 = scmp.eq.s32.totalorder %s27, 1
      %p223 = por %p221, %p222
      %p225 = scmp.ne.s32.totalorder %s210, %s224
      %p226 = scmp.eq.s32.totalorder %s27, 0
      %p227 = por %p225, %p226
      %s229 = sadd.s32 %s228, 1
      %p232 = scmp.eq.s32.totalorder %s21, 1
      %p233 = scmp.ne.s32.totalorder %s228, %s230
      %p234 = scmp.eq.s32.totalorder %s21, 0
      %p235 = por %p233, %p234
      %p236 = scmp.ne.s32.totalorder %s228, %s230
      %p237 = scmp.eq.s32.totalorder %s26, 1
      %p238 = por %p236, %p237
      %p239 = scmp.ne.s32.totalorder %s230, %s231
      %p240 = scmp.eq.s32.totalorder %s26, 0
      %p241 = por %p239, %p240
      %p242 = scmp.ne.s32.totalorder %s230, %s231
      %p243 = scmp.eq.s32.totalorder %s27, 1
      %p244 = por %p242, %p243
      %p246 = scmp.ne.s32.totalorder %s231, %s245
      %p247 = scmp.eq.s32.totalorder %s27, 0
      %p248 = por %p246, %p247
      %s250 = sadd.s32 %s249, 1
      %p253 = scmp.eq.s32.totalorder %s21, 1
      %p254 = scmp.ne.s32.totalorder %s249, %s251
      %p255 = scmp.eq.s32.totalorder %s21, 0
      %p256 = por %p254, %p255
      %p257 = scmp.ne.s32.totalorder %s249, %s251
      %p258 = scmp.eq.s32.totalorder %s26, 1
      %p259 = por %p257, %p258
      %p260 = scmp.ne.s32.totalorder %s251, %s252
      %p261 = scmp.eq.s32.totalorder %s26, 0
      %p262 = por %p260, %p261
      %p263 = scmp.ne.s32.totalorder %s251, %s252
      %p264 = scmp.eq.s32.totalorder %s27, 1
      %p265 = por %p263, %p264
      %p267 = scmp.ne.s32.totalorder %s252, %s266
      %p268 = scmp.eq.s32.totalorder %s27, 0
      %p269 = por %p267, %p268
      %s271 = sadd.s32 %s270, 1
      %p274 = scmp.eq.s32.totalorder %s21, 1
      %p275 = scmp.ne.s32.totalorder %s270, %s272
      %p276 = scmp.eq.s32.totalorder %s21, 0
      %p277 = por %p275, %p276
      %p278 = scmp.ne.s32.totalorder %s270, %s272
      %p279 = scmp.eq.s32.totalorder %s26, 1
      %p280 = por %p278, %p279
      %p281 = scmp.ne.s32.totalorder %s272, %s273
      %p282 = scmp.eq.s32.totalorder %s26, 0
      %p283 = por %p281, %p282
      %p284 = scmp.ne.s32.totalorder %s272, %s273
      %p285 = scmp.eq.s32.totalorder %s27, 1
      %p286 = por %p284, %p285
      %p288 = scmp.ne.s32.totalorder %s273, %s287
      %p289 = scmp.eq.s32.totalorder %s27, 0
      %p290 = por %p288, %p289
      %s291 = ssub.s32 %s21, %s28
      %p292 = scmp.eq.s32.totalorder %s291, 0
      %s294 = sadd.s32 %s293, 1
      %s295 = scalar_select %p292, %s293, %s294
      %p298 = pneg %p292
      %p299 = scmp.eq.s32.totalorder %s21, 1
      %p300 = por %p298, %p299
      %p301 = scmp.ne.s32.totalorder %s293, %s296
      %p302 = scmp.eq.s32.totalorder %s21, 0
      %p303 = por %p301, %p302
      %p304 = scmp.ne.s32.totalorder %s293, %s296
      %p305 = scmp.eq.s32.totalorder %s26, 1
      %p306 = por %p304, %p305
      %p307 = scmp.ne.s32.totalorder %s296, %s297
      %p308 = scmp.eq.s32.totalorder %s26, 0
      %p309 = por %p307, %p308
      %p310 = scmp.ne.s32.totalorder %s296, %s297
      %p311 = scmp.eq.s32.totalorder %s27, 1
      %p312 = por %p310, %p311
      %p314 = scmp.ne.s32.totalorder %s297, %s313
      %p315 = scmp.eq.s32.totalorder %s27, 0
      %p316 = por %p314, %p315
      %p317 = scmp.le.s32.totalorder 1, %s21
      %p318 = scmp.lt.s32.totalorder %s21, 3
      %p319 = pnand %p317, %p318
      %p320 = pneg %p319
      // Predicated region
      $region9: #{encoder_layer.5} parent=5 // pred_check
        _
      $region10: #{encoder_layer.5} parent=5 // pred_check_branch
        %322 = sbr.rel (%p319) target = $region12
      $region11: #{encoder_layer.5} parent=5 // pred_region
        %s323 = ssub.s32 %s21, 1
        // Predicated region
        $region13: #{encoder_layer.5} parent=11 // pred_check
          %p324 = pneg %p94
        $region14: #{encoder_layer.5} parent=11 // pred_check_branch
          %326 = sbr.rel (%p324) target = $region16
        $region15: #{encoder_layer.5} parent=11 // pred_region
          _
        $region16: #{encoder_layer.5} parent=11 // pred_fallthru
          _
        // Predicated region
        $region17: #{encoder_layer.5} parent=11 // pred_check
          %p327 = pneg %p115
        $region18: #{encoder_layer.5} parent=11 // pred_check_branch
          %329 = sbr.rel (%p327) target = $region20
        $region19: #{encoder_layer.5} parent=11 // pred_region
          _
        $region20: #{encoder_layer.5} parent=11 // pred_fallthru
          _
        // Predicated region
        $region21: #{encoder_layer.5} parent=11 // pred_check
          %p330 = pneg %p136
        $region22: #{encoder_layer.5} parent=11 // pred_check_branch
          %332 = sbr.rel (%p330) target = $region24
        $region23: #{encoder_layer.5} parent=11 // pred_region
          _
        $region24: #{encoder_layer.5} parent=11 // pred_fallthru
          _
        // Predicated region
        $region25: #{encoder_layer.5} parent=11 // pred_check
          %p333 = pneg %p157
        $region26: #{encoder_layer.5} parent=11 // pred_check_branch
          %335 = sbr.rel (%p333) target = $region28
        $region27: #{encoder_layer.5} parent=11 // pred_region
          _
        $region28: #{encoder_layer.5} parent=11 // pred_fallthru
          _
        // Predicated region
        $region29: #{encoder_layer.5} parent=11 // pred_check
          %p336 = pneg %p178
        $region30: #{encoder_layer.5} parent=11 // pred_check_branch
          %338 = sbr.rel (%p336) target = $region32
        $region31: #{encoder_layer.5} parent=11 // pred_region
          _
        $region32: #{encoder_layer.5} parent=11 // pred_fallthru
          _
        // Predicated region
        $region33: #{encoder_layer.5} parent=11 // pred_check
          %p339 = pneg %p199
        $region34: #{encoder_layer.5} parent=11 // pred_check_branch
          %341 = sbr.rel (%p339) target = $region36
        $region35: #{encoder_layer.5} parent=11 // pred_region
          _
        $region36: #{encoder_layer.5} parent=11 // pred_fallthru
          _
        // Predicated region
        $region37: #{encoder_layer.5} parent=11 // pred_check
          %p342 = pneg %p220
        $region38: #{encoder_layer.5} parent=11 // pred_check_branch
          %344 = sbr.rel (%p342) target = $region40
        $region39: #{encoder_layer.5} parent=11 // pred_region
          _
        $region40: #{encoder_layer.5} parent=11 // pred_fallthru
          _
        // Predicated region
        $region41: #{encoder_layer.5} parent=11 // pred_check
          %p345 = pneg %p241
        $region42: #{encoder_layer.5} parent=11 // pred_check_branch
          %347 = sbr.rel (%p345) target = $region44
        $region43: #{encoder_layer.5} parent=11 // pred_region
          _
        $region44: #{encoder_layer.5} parent=11 // pred_fallthru
          _
        // Predicated region
        $region45: #{encoder_layer.5} parent=11 // pred_check
          %p348 = pneg %p262
        $region46: #{encoder_layer.5} parent=11 // pred_check_branch
          %350 = sbr.rel (%p348) target = $region48
        $region47: #{encoder_layer.5} parent=11 // pred_region
          _
        $region48: #{encoder_layer.5} parent=11 // pred_fallthru
          _
        // Predicated region
        $region49: #{encoder_layer.5} parent=11 // pred_check
          %p351 = pneg %p283
        $region50: #{encoder_layer.5} parent=11 // pred_check_branch
          %353 = sbr.rel (%p351) target = $region52
        $region51: #{encoder_layer.5} parent=11 // pred_region
          _
        $region52: #{encoder_layer.5} parent=11 // pred_fallthru
          _
      $region12: #{encoder_layer.5} parent=5 // pred_fallthru
        _
      %p354 = scmp.lt.s32.totalorder %s21, 2
      // Predicated region
      $region53: #{encoder_layer.5} parent=5 // pred_check
        %p355 = pneg %p354
      $region54: #{encoder_layer.5} parent=5 // pred_check_branch
        %357 = sbr.rel (%p355) target = $region56
      $region55: #{encoder_layer.5} parent=5 // pred_region
        // Predicated region
        $region57: #{encoder_layer.5} parent=55 // pred_check
          %p358 = pneg %p41
        $region58: #{encoder_layer.5} parent=55 // pred_check_branch
          %360 = sbr.rel (%p358) target = $region60
        $region59: #{encoder_layer.5} parent=55 // pred_region
          %p361 = scmp.lt.s32.totalorder %s21, 1
          %s362 = scalar_select %p361, %s21, 1
          %s363 = smul.addr %s362, 8
          %s364 = scalar_lea.vmem %s0, %s363
        $region60: #{encoder_layer.5} parent=55 // pred_fallthru
          _
        // Predicated region
        $region61: #{encoder_layer.5} parent=55 // pred_check
          %p365 = pneg %p67
        $region62: #{encoder_layer.5} parent=55 // pred_check_branch
          %367 = sbr.rel (%p365) target = $region64
        $region63: #{encoder_layer.5} parent=55 // pred_region
          %p368 = scmp.lt.s32.totalorder %s21, 1
          %s369 = scalar_select %p368, %s21, 1
          %s370 = smul.addr %s369, 8
          %s371 = scalar_lea.vmem %s1, %s370
        $region64: #{encoder_layer.5} parent=55 // pred_fallthru
          _
      $region56: #{encoder_layer.5} parent=5 // pred_fallthru
        _
      %p372 = scmp.le.s32.totalorder 1, %s21
      %p373 = scmp.lt.s32.totalorder %s21, 3
      %p374 = pnand %p372, %p373
      %p375 = pneg %p374
      // Predicated region
      $region65: #{encoder_layer.5} parent=5 // pred_check
        _
      $region66: #{encoder_layer.5} parent=5 // pred_check_branch
        %377 = sbr.rel (%p374) target = $region68
      $region67: #{encoder_layer.5} parent=5 // pred_region
        %s378 = ssub.s32 %s21, 1
        %p379 = scmp.lt.s32.totalorder %s26, 1
        %s380 = scalar_select %p379, %s26, 1
        %s381 = smul.addr %s380, 8
        %s382 = scalar_lea.vmem %s0, %s381
        %p383 = pneg %p47
        %p384 = pneg %p44
        %p385 = scmp.lt.s32.totalorder %s26, 1
        %s386 = scalar_select %p385, %s26, 1
        %s387 = smul.addr %s386, 8
        %s388 = scalar_lea.vmem %s1, %s387
        %p389 = pneg %p73
        %p390 = pneg %p70
        %p391 = pneg %p94
        %p392 = pneg %p91
        %p393 = pneg %p115
        %p394 = pneg %p112
        %p395 = pneg %p136
        %p396 = pneg %p133
        %p397 = pneg %p157
        %p398 = pneg %p154
        %p399 = pneg %p178
        %p400 = pneg %p175
        %p401 = pneg %p199
        %p402 = pneg %p196
        %p403 = pneg %p220
        %p404 = pneg %p217
        %p405 = pneg %p241
        %p406 = pneg %p238
        %p407 = pneg %p262
        %p408 = pneg %p259
        %p409 = pneg %p283
        %p410 = pneg %p280
        %p411 = pneg %p309
        %p412 = pneg %p306
        %s413 = sand.u32 %s296, 1
        %s414 = scalar_lea.sflag [#allocation3], %s413
        %s415 = sand.u32 %s296, 1
        %s416 = smul.addr %s415, 8
        %s417 = scalar_lea.vmem [#allocation2], %s416
        %p418 = scmp.lt.s32.totalorder %s26, 1
        %s419 = scalar_select %p418, %s26, 1
        %s420 = smul.addr %s419, 8
        %s421 = scalar_lea.vmem %s0, %s420
        %p422 = scmp.lt.s32.totalorder %s26, 1
        %s423 = scalar_select %p422, %s26, 1
        %s424 = smul.addr %s423, 8
        %s425 = scalar_lea.vmem %s1, %s424
        %v427 = vld [vmem:[%s421] sm:$0xff]
        %v428 = vpack.c.bf16 %v427, %v427
        %v429 = vld [vmem:[%s2] sm:$0xf]
        %v430 = vld [vmem:[%s2 + $0x4] sm:$0xf]
        %v431 = vld [vmem:[%s2 + $0x8] sm:$0xf]
        %v432 = vld [vmem:[%s2 + $0xc] sm:$0xf]
        %v433 = vld [vmem:[%s3] sm:$0x1]
        %v435 = vlaneseq
        %v436 = vshrl.u32 %v435, 7
        %v437 = vsub.s32 0, %v436
        %v438 = vrot.slane %v433, %v437
        %v444 = vunpack.c.l.b16 %v429
        %v445 = vunpack.c.l.b16 %v430
        %v446 = vunpack.c.l.b16 %v431
        %v447 = vunpack.c.l.b16 %v432
        %v448 = vpack.c.b16 %v445, %v444
        %v449 = vpack.c.b16 %v447, %v446
        %vm452 = vcmask 261120
        %v454 = vsel %vm452, %v428, 0
        %456 = vmatprep.subr.bf16.mxu0 0
        %457 = vmatpush1.bf16.msra.mxu0 0
        %458 = vmatprep.subr.bf16.mxu0 0
        %459 = vmatpush1.bf16.msra.mxu0 0
        %460 = vmatprep.subr.bf16.mxu0 0
        %461 = vmatpush1.bf16.msra.mxu0 0
        %462 = vmatprep.subr.bf16.mxu0 0
        %463 = vmatpush1.bf16.msra.mxu0 0
        %464 = vmatprep.subr.bf16.mxu0 0
        %465 = vmatpush1.bf16.msra.mxu0 0
        %466 = vmatprep.subr.bf16.mxu0 0
        %467 = vmatpush1.bf16.msra.mxu0 0
        %468 = vmatprep.subr.bf16.mxu0 0
        %469 = vmatpush1.bf16.msra.mxu0 %v449
        %470 = vmatprep.subr.bf16.mxu0 0
        %471 = vmatpush1.bf16.msra.mxu0 %v448
        %472 = vmatprep.subr.bf16.mxu0 0
        %473 = vmatpush2.bf16.msra.mxu0 0
        %474 = vmatprep.subr.bf16.mxu0 0
        %475 = vmatpush2.bf16.msra.mxu0 0
        %476 = vmatprep.subr.bf16.mxu0 0
        %477 = vmatpush2.bf16.msra.mxu0 0
        %478 = vmatprep.subr.bf16.mxu0 0
        %479 = vmatpush2.bf16.msra.mxu0 0
        %480 = vmatprep.subr.bf16.mxu0 0
        %481 = vmatpush2.bf16.msra.mxu0 0
        %482 = vmatprep.subr.bf16.mxu0 0
        %483 = vmatpush2.bf16.msra.mxu0 0
        %484 = vmatprep.subr.bf16.mxu0 0
        %485 = vmatpush2.bf16.msra.mxu0 0
        %486 = vmatprep.subr.bf16.mxu0 0
        %487 = vmatpush2.bf16.msra.mxu0 0
        %488 = vmatprep.mubr.bf16.mxu0 0
        %489 = vmatmul.mubr.bf16.gmra.mxu0 %v454
        %v490 = vpop.f32.mrf.mxu0
        %v491 = vadd.f32 %v438, %v490
        %v492 = vpop.f32.mrf.mxu0
        %v493 = vpop.f32.mrf.mxu0
        %v494 = vpop.f32.mrf.mxu0
        %495 = vdwg.mxu0
        %v496 = vld [vmem:[%s425] sm:$0xff]
        %v497 = vadd.f32 %v491, %v496
        %v498 = vld [vmem:[%s4] sm:$0x1]
        %v499 = vld [vmem:[%s5] sm:$0x1]
        %v500 = vsel %vm452, %v497, 0.0
        %501 = vadd.xlane.f32.xlu0 %v500
        %v502 = vpop.xlane.xlu0 %501
        %v503 = vrcp.pop 32.0
        %v504 = vmul.f32 %v502, %v503
        %v505 = vsub.f32 %v497, %v504
        %v506 = vmul.f32 %v505, %v505
        %v507 = vsel %vm452, %v506, 0.0
        %508 = vadd.xlane.f32.xlu0 %v507
        %v509 = vpop.xlane.xlu0 %508
        %v510 = vmul.f32 %v509, %v503
        %v511 = vadd.f32 %v510, 1e-05
        %v512 = vrsqrt.pop %v511
        %v513 = vmul.f32 %v505, %v512
        %v515 = vlaneseq
        %v516 = vshrl.u32 %v515, 7
        %v517 = vsub.s32 0, %v516
        %v518 = vrot.slane %v498, %v517
        %v520 = vmul.f32 %v513, %v518
        %v522 = vlaneseq
        %v523 = vshrl.u32 %v522, 7
        %v524 = vsub.s32 0, %v523
        %v525 = vrot.slane %v499, %v524
        %v527 = vadd.f32 %v520, %v525
        %v528 = vpack.c.bf16 %v527, %v527
        %v529 = vld [vmem:[%s6] sm:$0xf]
        %v530 = vld [vmem:[%s6 + $0x4] sm:$0xf]
        %v531 = vld [vmem:[%s6 + $0x8] sm:$0xf]
        %v532 = vld [vmem:[%s6 + $0xc] sm:$0xf]
        %v533 = vld [vmem:[%s7] sm:$0x1]
        %v535 = vlaneseq
        %v536 = vshrl.u32 %v535, 7
        %v537 = vsub.s32 0, %v536
        %v538 = vrot.slane %v533, %v537
        %v544 = vunpack.c.l.b16 %v529
        %v545 = vunpack.c.l.b16 %v530
        %v546 = vunpack.c.l.b16 %v531
        %v547 = vunpack.c.l.b16 %v532
        %v548 = vpack.c.b16 %v545, %v544
        %v549 = vpack.c.b16 %v547, %v546
        %v553 = vsel %vm452, %v528, 0
        %555 = vmatprep.subr.bf16.mxu0 0
        %556 = vmatpush1.bf16.msra.mxu0 0
        %557 = vmatprep.subr.bf16.mxu0 0
        %558 = vmatpush1.bf16.msra.mxu0 0
        %559 = vmatprep.subr.bf16.mxu0 0
        %560 = vmatpush1.bf16.msra.mxu0 0
        %561 = vmatprep.subr.bf16.mxu0 0
        %562 = vmatpush1.bf16.msra.mxu0 0
        %563 = vmatprep.subr.bf16.mxu0 0
        %564 = vmatpush1.bf16.msra.mxu0 0
        %565 = vmatprep.subr.bf16.mxu0 0
        %566 = vmatpush1.bf16.msra.mxu0 0
        %567 = vmatprep.subr.bf16.mxu0 0
        %568 = vmatpush1.bf16.msra.mxu0 %v549
        %569 = vmatprep.subr.bf16.mxu0 0
        %570 = vmatpush1.bf16.msra.mxu0 %v548
        %571 = vmatprep.subr.bf16.mxu0 0
        %572 = vmatpush2.bf16.msra.mxu0 0
        %573 = vmatprep.subr.bf16.mxu0 0
        %574 = vmatpush2.bf16.msra.mxu0 0
        %575 = vmatprep.subr.bf16.mxu0 0
        %576 = vmatpush2.bf16.msra.mxu0 0
        %577 = vmatprep.subr.bf16.mxu0 0
        %578 = vmatpush2.bf16.msra.mxu0 0
        %579 = vmatprep.subr.bf16.mxu0 0
        %580 = vmatpush2.bf16.msra.mxu0 0
        %581 = vmatprep.subr.bf16.mxu0 0
        %582 = vmatpush2.bf16.msra.mxu0 0
        %583 = vmatprep.subr.bf16.mxu0 0
        %584 = vmatpush2.bf16.msra.mxu0 0
        %585 = vmatprep.subr.bf16.mxu0 0
        %586 = vmatpush2.bf16.msra.mxu0 0
        %587 = vmatprep.mubr.bf16.mxu0 0
        %588 = vmatmul.mubr.bf16.gmra.mxu0 %v553
        %v589 = vpop.f32.mrf.mxu0
        %v590 = vadd.f32 %v538, %v589
        %v591 = vpop.f32.mrf.mxu0
        %v592 = vpop.f32.mrf.mxu0
        %v593 = vpop.f32.mrf.mxu0
        %594 = vdwg.mxu0
        %v595 = vmax.f32 %v590, 0.0
        %v596 = vpack.c.bf16 %v595, %v595
        %v597 = vld [vmem:[%s8] sm:$0xf]
        %v598 = vld [vmem:[%s8 + $0x4] sm:$0xf]
        %v599 = vld [vmem:[%s8 + $0x8] sm:$0xf]
        %v600 = vld [vmem:[%s8 + $0xc] sm:$0xf]
        %v601 = vld [vmem:[%s8 + $0x10] sm:$0xf]
        %v602 = vld [vmem:[%s8 + $0x14] sm:$0xf]
        %v603 = vld [vmem:[%s8 + $0x18] sm:$0xf]
        %v604 = vld [vmem:[%s8 + $0x1c] sm:$0xf]
        %v605 = vld [vmem:[%s9] sm:$0x1]
        %v607 = vlaneseq
        %v608 = vshrl.u32 %v607, 7
        %v609 = vsub.s32 0, %v608
        %v610 = vrot.slane %v605, %v609
        %v620 = vunpack.c.l.b16 %v597
        %v621 = vunpack.c.l.b16 %v598
        %v622 = vunpack.c.l.b16 %v599
        %v623 = vunpack.c.l.b16 %v600
        %v624 = vunpack.c.l.b16 %v601
        %v625 = vunpack.c.l.b16 %v602
        %v626 = vunpack.c.l.b16 %v603
        %v627 = vunpack.c.l.b16 %v604
        %v628 = vpack.c.b16 %v621, %v620
        %v629 = vpack.c.b16 %v623, %v622
        %v630 = vpack.c.b16 %v625, %v624
        %v631 = vpack.c.b16 %v627, %v626
        %vm636 = vcmask 523264
        %v638 = vsel %vm636, %v596, 0
        %640 = vmatprep.subr.bf16.mxu0 0
        %641 = vmatpush1.bf16.msra.mxu0 0
        %642 = vmatprep.subr.bf16.mxu0 0
        %643 = vmatpush1.bf16.msra.mxu0 0
        %644 = vmatprep.subr.bf16.mxu0 0
        %645 = vmatpush1.bf16.msra.mxu0 0
        %646 = vmatprep.subr.bf16.mxu0 0
        %647 = vmatpush1.bf16.msra.mxu0 0
        %648 = vmatprep.subr.bf16.mxu0 0
        %649 = vmatpush1.bf16.msra.mxu0 %v631
        %650 = vmatprep.subr.bf16.mxu0 0
        %651 = vmatpush1.bf16.msra.mxu0 %v630
        %652 = vmatprep.subr.bf16.mxu0 0
        %653 = vmatpush1.bf16.msra.mxu0 %v629
        %654 = vmatprep.subr.bf16.mxu0 0
        %655 = vmatpush1.bf16.msra.mxu0 %v628
        %656 = vmatprep.subr.bf16.mxu0 0
        %657 = vmatpush2.bf16.msra.mxu0 0
        %658 = vmatprep.subr.bf16.mxu0 0
        %659 = vmatpush2.bf16.msra.mxu0 0
        %660 = vmatprep.subr.bf16.mxu0 0
        %661 = vmatpush2.bf16.msra.mxu0 0
        %662 = vmatprep.subr.bf16.mxu0 0
        %663 = vmatpush2.bf16.msra.mxu0 0
        %664 = vmatprep.subr.bf16.mxu0 0
        %665 = vmatpush2.bf16.msra.mxu0 0
        %666 = vmatprep.subr.bf16.mxu0 0
        %667 = vmatpush2.bf16.msra.mxu0 0
        %668 = vmatprep.subr.bf16.mxu0 0
        %669 = vmatpush2.bf16.msra.mxu0 0
        %670 = vmatprep.subr.bf16.mxu0 0
        %671 = vmatpush2.bf16.msra.mxu0 0
        %672 = vmatprep.mubr.bf16.mxu0 0
        %673 = vmatmul.mubr.bf16.gmra.mxu0 %v638
        %v674 = vpop.f32.mrf.mxu0
        %v675 = vadd.f32 %v610, %v674
        %v676 = vpop.f32.mrf.mxu0
        %v677 = vpop.f32.mrf.mxu0
        %v678 = vpop.f32.mrf.mxu0
        %679 = vdwg.mxu0
        %v680 = vadd.f32 %v675, %v527
        %v681 = vld [vmem:[%s10] sm:$0x1]
        %v682 = vld [vmem:[%s11] sm:$0x1]
        %v683 = vsel %vm452, %v680, 0.0
        %684 = vadd.xlane.f32.xlu0 %v683
        %v685 = vpop.xlane.xlu0 %684
        %v686 = vmul.f32 %v685, %v503
        %v687 = vsub.f32 %v680, %v686
        %v688 = vmul.f32 %v687, %v687
        %v689 = vsel %vm452, %v688, 0.0
        %690 = vadd.xlane.f32.xlu0 %v689
        %v691 = vpop.xlane.xlu0 %690
        %v692 = vmul.f32 %v691, %v503
        %v693 = vadd.f32 %v692, 1e-05
        %v694 = vrsqrt.pop %v693
        %v695 = vmul.f32 %v687, %v694
        %v697 = vlaneseq
        %v698 = vshrl.u32 %v697, 7
        %v699 = vsub.s32 0, %v698
        %v700 = vrot.slane %v681, %v699
        %v702 = vmul.f32 %v695, %v700
        %v704 = vlaneseq
        %v705 = vshrl.u32 %v704, 7
        %v706 = vsub.s32 0, %v705
        %v707 = vrot.slane %v682, %v706
        %v709 = vadd.f32 %v702, %v707
        %710 = vst.msk [vmem:[%s417] sm:$0xff] %vm452, %v709
        %s711 = sand.u32 %s296, 1
        %s712 = scalar_lea.sflag [#allocation3], %s711
        %s713 = sand.u32 %s296, 1
        %s714 = smul.addr %s713, 8
        %s715 = scalar_lea.vmem [#allocation2], %s714
        // Predicated region
        $region69: #{encoder_layer.5} parent=67 // pred_check
          %p716 = pneg %p306
        $region70: #{encoder_layer.5} parent=67 // pred_check_branch
          %718 = sbr.rel (%p716) target = $region72
        $region71: #{encoder_layer.5} parent=67 // pred_region
          %s720 = ssub.s32 128, 128
          %721 = vsyncadd %s712, %s720
          %s722 = smul.addr %s26, 128
          %s723 = scalar_lea.hbm %s12, %s722
          %s725 = sshll.u32 %s715, 4
          %s726 = int_to_ptr.vmem [resolvable:$true] %s725
          %728 = dma.vmem_to_hbm [thread:$0]  %s726, 128, %s723, %s712
        $region72: #{encoder_layer.5} parent=67 // pred_fallthru
          _
      $region68: #{encoder_layer.5} parent=5 // pred_fallthru
        _
      %p729 = scmp.le.s32.totalorder 2, %s21
      // Predicated region
      $region73: #{encoder_layer.5} parent=5 // pred_check
        %p730 = pneg %p729
      $region74: #{encoder_layer.5} parent=5 // pred_check_branch
        %732 = sbr.rel (%p730) target = $region76
      $region75: #{encoder_layer.5} parent=5 // pred_region
        %s733 = ssub.s32 %s21, 2
        // Predicated region
        $region77: #{encoder_layer.5} parent=75 // pred_check
          %p734 = pneg %p312
        $region78: #{encoder_layer.5} parent=75 // pred_check_branch
          %736 = sbr.rel (%p734) target = $region80
        $region79: #{encoder_layer.5} parent=75 // pred_region
          %s737 = sand.u32 %s297, 1
          %s738 = scalar_lea.sflag [#allocation3], %s737
          %s739 = sand.u32 %s297, 1
          %s740 = smul.addr %s739, 8
          %s741 = scalar_lea.vmem [#allocation2], %s740
          %742 = dma.done %s738, 128
        $region80: #{encoder_layer.5} parent=75 // pred_fallthru
          _
      $region76: #{encoder_layer.5} parent=5 // pred_fallthru
        _
    $region6: #{encoder_layer.5} parent=1 // loop_footer
      %s25 = sadd.s32 1, %s21
    $region7: #{encoder_layer.5} parent=1 // loop_footer_branch
      %20 = sbr.rel target = $region3
    $region8: #{encoder_layer.5} parent=1 // loop_exit
      _
    %743 = vsyncpa [#allocation3], 1
    %s744 = scalar_lea.sflag [#allocation3], 1
    %745 = vsyncpa %s744, 1

// kernel: encoder_layer.3
$region0: #{encoder_layer.3}
  #allocation0 [shape = 'u32[]', space=smem, size = 0x4, offset = 0x4, fixed_abs, tag = 'smem constant byte address 0x4 - core index']
  #allocation1 [shape = 'u32[144,128]{1,0:T(1,128)}', space=vmem, size = 0x12000, scoped, tag = 'internal scratch']
  %s0 = inlined_call_operand.vmem [shape: f32[16,32], index: 0, kind: input, shape index: {}]
  %s1 = inlined_call_operand.vmem [shape: bf16[32,96], index: 1, kind: input, shape index: {}]
  %s2 = inlined_call_operand.vmem [shape: f32[1,96], index: 2, kind: input, shape index: {}]
  %s3 = inlined_call_operand.vmem [shape: f32[16,96], index: 3, kind: output, shape index: {}]
  %s4 = sld [smem:[#allocation0]]
  $region45: #{encoder_layer.3} parent=0
    _
  %s6 = ssub.s32 1, %s4
  %s7 = scalar_select 0, %s6, %s4
  loop: start=0, step=1, limit=4
  $region2: #{encoder_layer.3} parent=0 // loop_pre_header
    _
  $region3: #{encoder_layer.3} parent=0 // loop_header
    %s9 = sphi 0, %s13
    %p10 = scmp.ge.s32.totalorder %s9, 4
    %s19 = sphi 0, %s21
    %s22 = sphi 0, %s19
    %s23 = sphi 0, %s22
    %s39 = sphi 0, %s23
    %s43 = sphi 0, %s43
    %s45 = sphi 0, %s43
    %s46 = sphi 0, %s45
    %s60 = sphi 0, %s46
    %s64 = sphi 0, %s64
    %s66 = sphi 0, %s64
    %s67 = sphi 0, %s66
    %s81 = sphi 0, %s67
    %s87 = sphi 0, %s89
    %s90 = sphi 0, %s87
    %s91 = sphi 0, %s90
    %s107 = sphi 0, %s91
  $region4: #{encoder_layer.3} parent=0 // loop_header_branch
    %12 = sbr.rel (%p10) target = $region8
  $region5: #{encoder_layer.3} parent=0 // loop_body
    %s14 = ssub.s32 %s9, 1
    %s15 = ssub.s32 %s9, 2
    %s16 = sadd.s32 %s9, 1
    %s17 = ssub.s32 %s9, %s16
    %p18 = scmp.eq.s32.totalorder %s17, 0
    %s20 = sadd.s32 %s19, 1
    %s21 = scalar_select %p18, %s19, %s20
    %p24 = pneg %p18
    %p25 = scmp.eq.s32.totalorder %s9, 1
    %p26 = por %p24, %p25
    %p27 = scmp.ne.s32.totalorder %s19, %s22
    %p28 = scmp.eq.s32.totalorder %s9, 0
    %p29 = por %p27, %p28
    %p30 = scmp.ne.s32.totalorder %s19, %s22
    %p31 = scmp.eq.s32.totalorder %s14, 1
    %p32 = por %p30, %p31
    %p33 = scmp.ne.s32.totalorder %s22, %s23
    %p34 = scmp.eq.s32.totalorder %s14, 0
    %p35 = por %p33, %p34
    %p36 = scmp.ne.s32.totalorder %s22, %s23
    %p37 = scmp.eq.s32.totalorder %s15, 1
    %p38 = por %p36, %p37
    %p40 = scmp.ne.s32.totalorder %s23, %s39
    %p41 = scmp.eq.s32.totalorder %s15, 0
    %p42 = por %p40, %p41
    %s44 = sadd.s32 %s43, 1
    %p47 = scmp.eq.s32.totalorder %s9, 1
    %p48 = scmp.ne.s32.totalorder %s43, %s45
    %p49 = scmp.eq.s32.totalorder %s9, 0
    %p50 = por %p48, %p49
    %p51 = scmp.ne.s32.totalorder %s43, %s45
    %p52 = scmp.eq.s32.totalorder %s14, 1
    %p53 = por %p51, %p52
    %p54 = scmp.ne.s32.totalorder %s45, %s46
    %p55 = scmp.eq.s32.totalorder %s14, 0
    %p56 = por %p54, %p55
    %p57 = scmp.ne.s32.totalorder %s45, %s46
    %p58 = scmp.eq.s32.totalorder %s15, 1
    %p59 = por %p57, %p58
    %p61 = scmp.ne.s32.totalorder %s46, %s60
    %p62 = scmp.eq.s32.totalorder %s15, 0
    %p63 = por %p61, %p62
    %s65 = sadd.s32 %s64, 1
    %p68 = scmp.eq.s32.totalorder %s9, 1
    %p69 = scmp.ne.s32.totalorder %s64, %s66
    %p70 = scmp.eq.s32.totalorder %s9, 0
    %p71 = por %p69, %p70
    %p72 = scmp.ne.s32.totalorder %s64, %s66
    %p73 = scmp.eq.s32.totalorder %s14, 1
    %p74 = por %p72, %p73
    %p75 = scmp.ne.s32.totalorder %s66, %s67
    %p76 = scmp.eq.s32.totalorder %s14, 0
    %p77 = por %p75, %p76
    %p78 = scmp.ne.s32.totalorder %s66, %s67
    %p79 = scmp.eq.s32.totalorder %s15, 1
    %p80 = por %p78, %p79
    %p82 = scmp.ne.s32.totalorder %s67, %s81
    %p83 = scmp.eq.s32.totalorder %s15, 0
    %p84 = por %p82, %p83
    %s85 = ssub.s32 %s9, %s16
    %p86 = scmp.eq.s32.totalorder %s85, 0
    %s88 = sadd.s32 %s87, 1
    %s89 = scalar_select %p86, %s87, %s88
    %p92 = pneg %p86
    %p93 = scmp.eq.s32.totalorder %s9, 1
    %p94 = por %p92, %p93
    %p95 = scmp.ne.s32.totalorder %s87, %s90
    %p96 = scmp.eq.s32.totalorder %s9, 0
    %p97 = por %p95, %p96
    %p98 = scmp.ne.s32.totalorder %s87, %s90
    %p99 = scmp.eq.s32.totalorder %s14, 1
    %p100 = por %p98, %p99
    %p101 = scmp.ne.s32.totalorder %s90, %s91
    %p102 = scmp.eq.s32.totalorder %s14, 0
    %p103 = por %p101, %p102
    %p104 = scmp.ne.s32.totalorder %s90, %s91
    %p105 = scmp.eq.s32.totalorder %s15, 1
    %p106 = por %p104, %p105
    %p108 = scmp.ne.s32.totalorder %s91, %s107
    %p109 = scmp.eq.s32.totalorder %s15, 0
    %p110 = por %p108, %p109
    %p111 = scmp.le.s32.totalorder 1, %s9
    %p112 = scmp.lt.s32.totalorder %s9, 3
    %p113 = pnand %p111, %p112
    %p114 = pneg %p113
    // Predicated region
    $region9: #{encoder_layer.3} parent=5 // pred_check
      _
    $region10: #{encoder_layer.3} parent=5 // pred_check_branch
      %116 = sbr.rel (%p113) target = $region12
    $region11: #{encoder_layer.3} parent=5 // pred_region
      %s117 = ssub.s32 %s9, 1
      // Predicated region
      $region13: #{encoder_layer.3} parent=11 // pred_check
        %p118 = pneg %p56
      $region14: #{encoder_layer.3} parent=11 // pred_check_branch
        %120 = sbr.rel (%p118) target = $region16
      $region15: #{encoder_layer.3} parent=11 // pred_region
        _
      $region16: #{encoder_layer.3} parent=11 // pred_fallthru
        _
      // Predicated region
      $region17: #{encoder_layer.3} parent=11 // pred_check
        %p121 = pneg %p77
      $region18: #{encoder_layer.3} parent=11 // pred_check_branch
        %123 = sbr.rel (%p121) target = $region20
      $region19: #{encoder_layer.3} parent=11 // pred_region
        _
      $region20: #{encoder_layer.3} parent=11 // pred_fallthru
        _
    $region12: #{encoder_layer.3} parent=5 // pred_fallthru
      _
    %p124 = scmp.lt.s32.totalorder %s9, 2
    // Predicated region
    $region21: #{encoder_layer.3} parent=5 // pred_check
      %p125 = pneg %p124
    $region22: #{encoder_layer.3} parent=5 // pred_check_branch
      %127 = sbr.rel (%p125) target = $region24
    $region23: #{encoder_layer.3} parent=5 // pred_region
      // Predicated region
      $region25: #{encoder_layer.3} parent=23 // pred_check
        %p128 = pneg %p29
      $region26: #{encoder_layer.3} parent=23 // pred_check_branch
        %130 = sbr.rel (%p128) target = $region28
      $region27: #{encoder_layer.3} parent=23 // pred_region
        %p131 = scmp.lt.s32.totalorder %s9, 1
        %s132 = scalar_select %p131, %s9, 1
        %s133 = smul.addr %s132, 8
        %s134 = scalar_lea.vmem %s0, %s133
      $region28: #{encoder_layer.3} parent=23 // pred_fallthru
        _
    $region24: #{encoder_layer.3} parent=5 // pred_fallthru
      _
    %p135 = scmp.le.s32.totalorder 1, %s9
    %p136 = scmp.lt.s32.totalorder %s9, 3
    %p137 = pnand %p135, %p136
    %p138 = pneg %p137
    // Predicated region
    $region29: #{encoder_layer.3} parent=5 // pred_check
      _
    $region30: #{encoder_layer.3} parent=5 // pred_check_branch
      %140 = sbr.rel (%p137) target = $region32
    $region31: #{encoder_layer.3} parent=5 // pred_region
      %s141 = ssub.s32 %s9, 1
      %p142 = scmp.lt.s32.totalorder %s14, 1
      %s143 = scalar_select %p142, %s14, 1
      %s144 = smul.addr %s143, 8
      %s145 = scalar_lea.vmem %s0, %s144
      %p146 = pneg %p35
      %p147 = pneg %p32
      %p148 = pneg %p56
      %p149 = pneg %p53
      %p150 = pneg %p77
      %p151 = pneg %p74
      %p152 = pneg %p103
      %p153 = pneg %p100
      %p154 = scmp.lt.s32.totalorder %s14, 1
      %s155 = scalar_select %p154, %s14, 1
      %s156 = smul.addr %s155, 8
      %s157 = scalar_lea.vmem %s3, %s156
      %p158 = scmp.lt.s32.totalorder %s14, 1
      %s159 = scalar_select %p158, %s14, 1
      %s160 = smul.addr %s159, 8
      %s161 = scalar_lea.vmem %s0, %s160
      %p162 = scmp.lt.s32.totalorder %s14, 1
      %s163 = scalar_select %p162, %s14, 1
      %s164 = smul.addr %s163, 8
      %s165 = scalar_lea.vmem %s3, %s164
      %v167 = vld [vmem:[%s161] sm:$0xff]
      %v168 = vpack.c.bf16 %v167, %v167
      %v169 = vld [vmem:[%s1] sm:$0xf]
      %v170 = vld [vmem:[%s1 + $0x4] sm:$0xf]
      %v171 = vld [vmem:[%s1 + $0x8] sm:$0xf]
      %v172 = vld [vmem:[%s1 + $0xc] sm:$0xf]
      %v173 = vld [vmem:[%s2] sm:$0x1]
      %v175 = vlaneseq
      %v176 = vshrl.u32 %v175, 7
      %v177 = vsub.s32 0, %v176
      %v178 = vrot.slane %v173, %v177
      %v184 = vunpack.c.l.b16 %v169
      %v185 = vunpack.c.l.b16 %v170
      %v186 = vunpack.c.l.b16 %v171
      %v187 = vunpack.c.l.b16 %v172
      %v188 = vpack.c.b16 %v185, %v184
      %v189 = vpack.c.b16 %v187, %v186
      %vm192 = vcmask 261120
      %v194 = vsel %vm192, %v168, 0
      %196 = vmatprep.subr.bf16.mxu0 0
      %197 = vmatpush1.bf16.msra.mxu0 0
      %198 = vmatprep.subr.bf16.mxu0 0
      %199 = vmatpush1.bf16.msra.mxu0 0
      %200 = vmatprep.subr.bf16.mxu0 0
      %201 = vmatpush1.bf16.msra.mxu0 0
      %202 = vmatprep.subr.bf16.mxu0 0
      %203 = vmatpush1.bf16.msra.mxu0 0
      %204 = vmatprep.subr.bf16.mxu0 0
      %205 = vmatpush1.bf16.msra.mxu0 0
      %206 = vmatprep.subr.bf16.mxu0 0
      %207 = vmatpush1.bf16.msra.mxu0 0
      %208 = vmatprep.subr.bf16.mxu0 0
      %209 = vmatpush1.bf16.msra.mxu0 %v189
      %210 = vmatprep.subr.bf16.mxu0 0
      %211 = vmatpush1.bf16.msra.mxu0 %v188
      %212 = vmatprep.subr.bf16.mxu0 0
      %213 = vmatpush2.bf16.msra.mxu0 0
      %214 = vmatprep.subr.bf16.mxu0 0
      %215 = vmatpush2.bf16.msra.mxu0 0
      %216 = vmatprep.subr.bf16.mxu0 0
      %217 = vmatpush2.bf16.msra.mxu0 0
      %218 = vmatprep.subr.bf16.mxu0 0
      %219 = vmatpush2.bf16.msra.mxu0 0
      %220 = vmatprep.subr.bf16.mxu0 0
      %221 = vmatpush2.bf16.msra.mxu0 0
      %222 = vmatprep.subr.bf16.mxu0 0
      %223 = vmatpush2.bf16.msra.mxu0 0
      %224 = vmatprep.subr.bf16.mxu0 0
      %225 = vmatpush2.bf16.msra.mxu0 0
      %226 = vmatprep.subr.bf16.mxu0 0
      %227 = vmatpush2.bf16.msra.mxu0 0
      %228 = vmatprep.mubr.bf16.mxu0 0
      %229 = vmatmul.mubr.bf16.gmra.mxu0 %v194
      %v230 = vpop.f32.mrf.mxu0
      %v231 = vadd.f32 %v178, %v230
      %v232 = vpop.f32.mrf.mxu0
      %v233 = vpop.f32.mrf.mxu0
      %v234 = vpop.f32.mrf.mxu0
      %235 = vdwg.mxu0
      %vm236 = vcmask 785408
      %237 = vst.msk [vmem:[%s165] sm:$0xff] %vm236, %v231
      %p238 = scmp.lt.s32.totalorder %s14, 1
      %s239 = scalar_select %p238, %s14, 1
      %s240 = smul.addr %s239, 8
      %s241 = scalar_lea.vmem %s3, %s240
      // Predicated region
      $region33: #{encoder_layer.3} parent=31 // pred_check
        %p242 = pneg %p100
      $region34: #{encoder_layer.3} parent=31 // pred_check_branch
        %244 = sbr.rel (%p242) target = $region36
      $region35: #{encoder_layer.3} parent=31 // pred_region
        _
      $region36: #{encoder_layer.3} parent=31 // pred_fallthru
        _
    $region32: #{encoder_layer.3} parent=5 // pred_fallthru
      _
    %p245 = scmp.le.s32.totalorder 2, %s9
    // Predicated region
    $region37: #{encoder_layer.3} parent=5 // pred_check
      %p246 = pneg %p245
    $region38: #{encoder_layer.3} parent=5 // pred_check_branch
      %248 = sbr.rel (%p246) target = $region40
    $region39: #{encoder_layer.3} parent=5 // pred_region
      %s249 = ssub.s32 %s9, 2
      // Predicated region
      $region41: #{encoder_layer.3} parent=39 // pred_check
        %p250 = pneg %p106
      $region42: #{encoder_layer.3} parent=39 // pred_check_branch
        %252 = sbr.rel (%p250) target = $region44
      $region43: #{encoder_layer.3} parent=39 // pred_region
        %p253 = scmp.lt.s32.totalorder %s15, 1
        %s254 = scalar_select %p253, %s15, 1
        %s255 = smul.addr %s254, 8
        %s256 = scalar_lea.vmem %s3, %s255
      $region44: #{encoder_layer.3} parent=39 // pred_fallthru
        _
    $region40: #{encoder_layer.3} parent=5 // pred_fallthru
      _
  $region6: #{encoder_layer.3} parent=0 // loop_footer
    %s13 = sadd.s32 1, %s9
  $region7: #{encoder_layer.3} parent=0 // loop_footer_branch
    %8 = sbr.rel target = $region3
  $region8: #{encoder_layer.3} parent=0 // loop_exit
    _

// kernel: encoder_layer.4
$region0: #{encoder_layer.4}
  #allocation0 [shape = 'u32[]', space=smem, size = 0x4, offset = 0x4, fixed_abs, tag = 'smem constant byte address 0x4 - core index']
  #allocation1 [shape = 'u32[144,128]{1,0:T(1,128)}', space=vmem, size = 0x12000, scoped, tag = 'internal scratch']
  %s0 = inlined_call_operand.vmem [shape: f32[8,8,8], index: 0, kind: input, shape index: {}]
  %s1 = inlined_call_operand.vmem [shape: f32[8,8,8], index: 1, kind: input, shape index: {}]
  %s2 = inlined_call_operand.vmem [shape: f32[8,8,8], index: 2, kind: input, shape index: {}]
  %s3 = inlined_call_operand.vmem [shape: f32[8,8,8], index: 3, kind: output, shape index: {0}]
  %s4 = inlined_call_operand.hbm [shape: f32[8,8,8], index: 4, kind: output, shape index: {1}]
  %5 = xla_tuple %s3, %s4
  %s6 = sld [smem:[#allocation0]]
  $region53: #{encoder_layer.4} parent=0
    _
  %s8 = ssub.s32 1, %s6
  %s9 = scalar_select 0, %s8, %s6
  $region1: #{encoder_layer.4} parent=0
    #allocation2 [shape = 'u8[32768]{0}', space=vmem, size = 0x8000, scoped, tag = 'output window, operand 1']
    #allocation3 [shape = 's32[2]{0}', space=sflag, size = 0x8, scoped, tag = 'scoped memory for encoder_layer.4']
    %10 = vsyncpa [#allocation3], 0
    %s11 = scalar_lea.sflag [#allocation3], 1
    %12 = vsyncpa %s11, 0
    loop: start=0, step=1, limit=4
    $region2: #{encoder_layer.4} parent=1 // loop_pre_header
      _
    $region3: #{encoder_layer.4} parent=1 // loop_header
      %s14 = sphi 0, %s18
      %p15 = scmp.ge.s32.totalorder %s14, 4
      %s24 = sphi 0, %s26
      %s27 = sphi 0, %s24
      %s28 = sphi 0, %s27
      %s44 = sphi 0, %s28
      %s50 = sphi 0, %s52
      %s53 = sphi 0, %s50
      %s54 = sphi 0, %s53
      %s70 = sphi 0, %s54
      %s76 = sphi 0, %s78
      %s79 = sphi 0, %s76
      %s80 = sphi 0, %s79
      %s96 = sphi 0, %s80
      %s102 = sphi 0, %s104
      %s105 = sphi 0, %s102
      %s106 = sphi 0, %s105
      %s122 = sphi 0, %s106
      %s128 = sphi 0, %s130
      %s131 = sphi 0, %s128
      %s132 = sphi 0, %s131
      %s148 = sphi 0, %s132
    $region4: #{encoder_layer.4} parent=1 // loop_header_branch
      %17 = sbr.rel (%p15) target = $region8
    $region5: #{encoder_layer.4} parent=1 // loop_body
      %s19 = ssub.s32 %s14, 1
      %s20 = ssub.s32 %s14, 2
      %s21 = sadd.s32 %s14, 1
      %s22 = ssub.s32 %s14, %s21
      %p23 = scmp.eq.s32.totalorder %s22, 0
      %s25 = sadd.s32 %s24, 1
      %s26 = scalar_select %p23, %s24, %s25
      %p29 = pneg %p23
      %p30 = scmp.eq.s32.totalorder %s14, 1
      %p31 = por %p29, %p30
      %p32 = scmp.ne.s32.totalorder %s24, %s27
      %p33 = scmp.eq.s32.totalorder %s14, 0
      %p34 = por %p32, %p33
      %p35 = scmp.ne.s32.totalorder %s24, %s27
      %p36 = scmp.eq.s32.totalorder %s19, 1
      %p37 = por %p35, %p36
      %p38 = scmp.ne.s32.totalorder %s27, %s28
      %p39 = scmp.eq.s32.totalorder %s19, 0
      %p40 = por %p38, %p39
      %p41 = scmp.ne.s32.totalorder %s27, %s28
      %p42 = scmp.eq.s32.totalorder %s20, 1
      %p43 = por %p41, %p42
      %p45 = scmp.ne.s32.totalorder %s28, %s44
      %p46 = scmp.eq.s32.totalorder %s20, 0
      %p47 = por %p45, %p46
      %s48 = ssub.s32 %s14, %s21
      %p49 = scmp.eq.s32.totalorder %s48, 0
      %s51 = sadd.s32 %s50, 1
      %s52 = scalar_select %p49, %s50, %s51
      %p55 = pneg %p49
      %p56 = scmp.eq.s32.totalorder %s14, 1
      %p57 = por %p55, %p56
      %p58 = scmp.ne.s32.totalorder %s50, %s53
      %p59 = scmp.eq.s32.totalorder %s14, 0
      %p60 = por %p58, %p59
      %p61 = scmp.ne.s32.totalorder %s50, %s53
      %p62 = scmp.eq.s32.totalorder %s19, 1
      %p63 = por %p61, %p62
      %p64 = scmp.ne.s32.totalorder %s53, %s54
      %p65 = scmp.eq.s32.totalorder %s19, 0
      %p66 = por %p64, %p65
      %p67 = scmp.ne.s32.totalorder %s53, %s54
      %p68 = scmp.eq.s32.totalorder %s20, 1
      %p69 = por %p67, %p68
      %p71 = scmp.ne.s32.totalorder %s54, %s70
      %p72 = scmp.eq.s32.totalorder %s20, 0
      %p73 = por %p71, %p72
      %s74 = ssub.s32 %s14, %s21
      %p75 = scmp.eq.s32.totalorder %s74, 0
      %s77 = sadd.s32 %s76, 1
      %s78 = scalar_select %p75, %s76, %s77
      %p81 = pneg %p75
      %p82 = scmp.eq.s32.totalorder %s14, 1
      %p83 = por %p81, %p82
      %p84 = scmp.ne.s32.totalorder %s76, %s79
      %p85 = scmp.eq.s32.totalorder %s14, 0
      %p86 = por %p84, %p85
      %p87 = scmp.ne.s32.totalorder %s76, %s79
      %p88 = scmp.eq.s32.totalorder %s19, 1
      %p89 = por %p87, %p88
      %p90 = scmp.ne.s32.totalorder %s79, %s80
      %p91 = scmp.eq.s32.totalorder %s19, 0
      %p92 = por %p90, %p91
      %p93 = scmp.ne.s32.totalorder %s79, %s80
      %p94 = scmp.eq.s32.totalorder %s20, 1
      %p95 = por %p93, %p94
      %p97 = scmp.ne.s32.totalorder %s80, %s96
      %p98 = scmp.eq.s32.totalorder %s20, 0
      %p99 = por %p97, %p98
      %s100 = ssub.s32 %s14, %s21
      %p101 = scmp.eq.s32.totalorder %s100, 0
      %s103 = sadd.s32 %s102, 1
      %s104 = scalar_select %p101, %s102, %s103
      %p107 = pneg %p101
      %p108 = scmp.eq.s32.totalorder %s14, 1
      %p109 = por %p107, %p108
      %p110 = scmp.ne.s32.totalorder %s102, %s105
      %p111 = scmp.eq.s32.totalorder %s14, 0
      %p112 = por %p110, %p111
      %p113 = scmp.ne.s32.totalorder %s102, %s105
      %p114 = scmp.eq.s32.totalorder %s19, 1
      %p115 = por %p113, %p114
      %p116 = scmp.ne.s32.totalorder %s105, %s106
      %p117 = scmp.eq.s32.totalorder %s19, 0
      %p118 = por %p116, %p117
      %p119 = scmp.ne.s32.totalorder %s105, %s106
      %p120 = scmp.eq.s32.totalorder %s20, 1
      %p121 = por %p119, %p120
      %p123 = scmp.ne.s32.totalorder %s106, %s122
      %p124 = scmp.eq.s32.totalorder %s20, 0
      %p125 = por %p123, %p124
      %s126 = ssub.s32 %s14, %s21
      %p127 = scmp.eq.s32.totalorder %s126, 0
      %s129 = sadd.s32 %s128, 1
      %s130 = scalar_select %p127, %s128, %s129
      %p133 = pneg %p127
      %p134 = scmp.eq.s32.totalorder %s14, 1
      %p135 = por %p133, %p134
      %p136 = scmp.ne.s32.totalorder %s128, %s131
      %p137 = scmp.eq.s32.totalorder %s14, 0
      %p138 = por %p136, %p137
      %p139 = scmp.ne.s32.totalorder %s128, %s131
      %p140 = scmp.eq.s32.totalorder %s19, 1
      %p141 = por %p139, %p140
      %p142 = scmp.ne.s32.totalorder %s131, %s132
      %p143 = scmp.eq.s32.totalorder %s19, 0
      %p144 = por %p142, %p143
      %p145 = scmp.ne.s32.totalorder %s131, %s132
      %p146 = scmp.eq.s32.totalorder %s20, 1
      %p147 = por %p145, %p146
      %p149 = scmp.ne.s32.totalorder %s132, %s148
      %p150 = scmp.eq.s32.totalorder %s20, 0
      %p151 = por %p149, %p150
      %p152 = scmp.le.s32.totalorder 1, %s14
      %p153 = scmp.lt.s32.totalorder %s14, 3
      %p154 = pnand %p152, %p153
      %p155 = pneg %p154
      // Predicated region
      $region9: #{encoder_layer.4} parent=5 // pred_check
        _
      $region10: #{encoder_layer.4} parent=5 // pred_check_branch
        %157 = sbr.rel (%p154) target = $region12
      $region11: #{encoder_layer.4} parent=5 // pred_region
        %s158 = ssub.s32 %s14, 1
      $region12: #{encoder_layer.4} parent=5 // pred_fallthru
        _
      %p159 = scmp.lt.s32.totalorder %s14, 2
      // Predicated region
      $region13: #{encoder_layer.4} parent=5 // pred_check
        %p160 = pneg %p159
      $region14: #{encoder_layer.4} parent=5 // pred_check_branch
        %162 = sbr.rel (%p160) target = $region16
      $region15: #{encoder_layer.4} parent=5 // pred_region
        // Predicated region
        $region17: #{encoder_layer.4} parent=15 // pred_check
          %p163 = pneg %p34
        $region18: #{encoder_layer.4} parent=15 // pred_check_branch
          %165 = sbr.rel (%p163) target = $region20
        $region19: #{encoder_layer.4} parent=15 // pred_region
          %s166 = smul.u32 4, %s14
          %p167 = scmp.lt.s32.totalorder %s166, 7
          %s168 = scalar_select %p167, %s166, 7
          %s169 = smul.addr %s168, 8
          %s170 = scalar_lea.vmem %s0, %s169
          %s171 = smul.u32 4, %s14
        $region20: #{encoder_layer.4} parent=15 // pred_fallthru
          _
        // Predicated region
        $region21: #{encoder_layer.4} parent=15 // pred_check
          %p172 = pneg %p60
        $region22: #{encoder_layer.4} parent=15 // pred_check_branch
          %174 = sbr.rel (%p172) target = $region24
        $region23: #{encoder_layer.4} parent=15 // pred_region
          %s175 = smul.u32 4, %s14
          %p176 = scmp.lt.s32.totalorder %s175, 7
          %s177 = scalar_select %p176, %s175, 7
          %s178 = smul.addr %s177, 8
          %s179 = scalar_lea.vmem %s1, %s178
          %s180 = smul.u32 4, %s14
        $region24: #{encoder_layer.4} parent=15 // pred_fallthru
          _
        // Predicated region
        $region25: #{encoder_layer.4} parent=15 // pred_check
          %p181 = pneg %p86
        $region26: #{encoder_layer.4} parent=15 // pred_check_branch
          %183 = sbr.rel (%p181) target = $region28
        $region27: #{encoder_layer.4} parent=15 // pred_region
          %s184 = smul.u32 4, %s14
          %p185 = scmp.lt.s32.totalorder %s184, 7
          %s186 = scalar_select %p185, %s184, 7
          %s187 = smul.addr %s186, 8
          %s188 = scalar_lea.vmem %s2, %s187
          %s189 = smul.u32 4, %s14
        $region28: #{encoder_layer.4} parent=15 // pred_fallthru
          _
      $region16: #{encoder_layer.4} parent=5 // pred_fallthru
        _
      %p190 = scmp.le.s32.totalorder 1, %s14
      %p191 = scmp.lt.s32.totalorder %s14, 3
      %p192 = pnand %p190, %p191
      %p193 = pneg %p192
      // Predicated region
      $region29: #{encoder_layer.4} parent=5 // pred_check
        _
      $region30: #{encoder_layer.4} parent=5 // pred_check_branch
        %195 = sbr.rel (%p192) target = $region32
      $region31: #{encoder_layer.4} parent=5 // pred_region
        %s196 = ssub.s32 %s14, 1
        %s197 = smul.u32 4, %s19
        %p198 = scmp.lt.s32.totalorder %s197, 7
        %s199 = scalar_select %p198, %s197, 7
        %s200 = smul.addr %s199, 8
        %s201 = scalar_lea.vmem %s0, %s200
        %p202 = pneg %p40
        %p203 = pneg %p37
        %s204 = smul.u32 4, %s19
        %p205 = scmp.lt.s32.totalorder %s204, 7
        %s206 = scalar_select %p205, %s204, 7
        %s207 = smul.addr %s206, 8
        %s208 = scalar_lea.vmem %s1, %s207
        %p209 = pneg %p66
        %p210 = pneg %p63
        %s211 = smul.u32 4, %s19
        %p212 = scmp.lt.s32.totalorder %s211, 7
        %s213 = scalar_select %p212, %s211, 7
        %s214 = smul.addr %s213, 8
        %s215 = scalar_lea.vmem %s2, %s214
        %p216 = pneg %p92
        %p217 = pneg %p89
        %p218 = pneg %p118
        %p219 = pneg %p115
        %s220 = smul.u32 4, %s19
        %p221 = scmp.lt.s32.totalorder %s220, 7
        %s222 = scalar_select %p221, %s220, 7
        %s223 = smul.addr %s222, 8
        %s224 = scalar_lea.vmem %s3, %s223
        %p225 = pneg %p144
        %p226 = pneg %p141
        %s227 = sand.u32 %s131, 1
        %s228 = scalar_lea.sflag [#allocation3], %s227
        %s229 = sand.u32 %s131, 1
        %s230 = smul.addr %s229, 32
        %s231 = scalar_lea.vmem [#allocation2], %s230
        %s232 = smul.u32 4, %s19
        %p233 = scmp.lt.s32.totalorder %s232, 7
        %s234 = scalar_select %p233, %s232, 7
        %s235 = smul.addr %s234, 8
        %s236 = scalar_lea.vmem %s0, %s235
        %s237 = smul.u32 4, %s19
        %s238 = smul.u32 4, %s19
        %p239 = scmp.lt.s32.totalorder %s238, 7
        %s240 = scalar_select %p239, %s238, 7
        %s241 = smul.addr %s240, 8
        %s242 = scalar_lea.vmem %s1, %s241
        %s243 = smul.u32 4, %s19
        %s244 = smul.u32 4, %s19
        %p245 = scmp.lt.s32.totalorder %s244, 7
        %s246 = scalar_select %p245, %s244, 7
        %s247 = smul.addr %s246, 8
        %s248 = scalar_lea.vmem %s2, %s247
        %s249 = smul.u32 4, %s19
        %s250 = smul.u32 4, %s19
        %p251 = scmp.lt.s32.totalorder %s250, 7
        %s252 = scalar_select %p251, %s250, 7
        %s253 = smul.addr %s252, 8
        %s254 = scalar_lea.vmem %s3, %s253
        %s255 = smul.u32 4, %s19
        %s256 = smul.u32 4, %s19
        %v258 = vld [vmem:[%s236] sm:$0xff]
        %v259 = vld [vmem:[%s236 + $0x8] sm:$0xff]
        %v260 = vld [vmem:[%s236 + $0x10] sm:$0xff]
        %v261 = vld [vmem:[%s236 + $0x18] sm:$0xff]
        %v262 = vpack.c.bf16 %v258, %v258
        %v263 = vpack.c.bf16 %v259, %v259
        %v264 = vpack.c.bf16 %v260, %v260
        %v265 = vpack.c.bf16 %v261, %v261
        %v266 = vld [vmem:[%s242] sm:$0xff]
        %v267 = vld [vmem:[%s242 + $0x8] sm:$0xff]
        %v268 = vld [vmem:[%s242 + $0x10] sm:$0xff]
        %v269 = vld [vmem:[%s242 + $0x18] sm:$0xff]
        %v270 = vpack.c.bf16 %v266, %v266
        %v271 = vpack.c.bf16 %v267, %v267
        %v272 = vpack.c.bf16 %v268, %v268
        %v273 = vpack.c.bf16 %v269, %v269
        %v274 = vld [vmem:[%s248] sm:$0xff]
        %v275 = vld [vmem:[%s248 + $0x8] sm:$0xff]
        %v276 = vld [vmem:[%s248 + $0x10] sm:$0xff]
        %v277 = vld [vmem:[%s248 + $0x18] sm:$0xff]
        %v278 = vpack.c.bf16 %v274, %v274
        %v279 = vpack.c.bf16 %v275, %v275
        %v280 = vpack.c.bf16 %v276, %v276
        %v281 = vpack.c.bf16 %v277, %v277
        %vm282 = vcmask 64512
        %v284 = vsel %vm282, %v262, 0
        %v287 = vsel %vm282, %v270, 0
        %289 = vmatprep.subr.bf16.mxu0 0
        %290 = vmatpush1.bf16.xpose.msra.mxu0 0
        %291 = vmatprep.subr.bf16.mxu0 0
        %292 = vmatpush1.bf16.xpose.msra.mxu0 0
        %293 = vmatprep.subr.bf16.mxu0 0
        %294 = vmatpush1.bf16.xpose.msra.mxu0 0
        %295 = vmatprep.subr.bf16.mxu0 0
        %296 = vmatpush1.bf16.xpose.msra.mxu0 0
        %297 = vmatprep.subr.bf16.mxu0 0
        %298 = vmatpush1.bf16.xpose.msra.mxu0 0
        %299 = vmatprep.subr.bf16.mxu0 0
        %300 = vmatpush1.bf16.xpose.msra.mxu0 0
        %301 = vmatprep.subr.bf16.mxu0 0
        %302 = vmatpush1.bf16.xpose.msra.mxu0 0
        %303 = vmatprep.subr.bf16.mxu0 0
        %304 = vmatpush1.bf16.xpose.msra.mxu0 %v287
        %305 = vmatprep.subr.bf16.mxu0 0
        %306 = vmatpush2.bf16.xpose.msra.mxu0 0
        %307 = vmatprep.subr.bf16.mxu0 0
        %308 = vmatpush2.bf16.xpose.msra.mxu0 0
        %309 = vmatprep.subr.bf16.mxu0 0
        %310 = vmatpush2.bf16.xpose.msra.mxu0 0
        %311 = vmatprep.subr.bf16.mxu0 0
        %312 = vmatpush2.bf16.xpose.msra.mxu0 0
        %313 = vmatprep.subr.bf16.mxu0 0
        %314 = vmatpush2.bf16.xpose.msra.mxu0 0
        %315 = vmatprep.subr.bf16.mxu0 0
        %316 = vmatpush2.bf16.xpose.msra.mxu0 0
        %317 = vmatprep.subr.bf16.mxu0 0
        %318 = vmatpush2.bf16.xpose.msra.mxu0 0
        %319 = vmatprep.subr.bf16.mxu0 0
        %320 = vmatpush2.bf16.xpose.msra.mxu0 0
        %321 = vmatprep.mubr.bf16.mxu0 0
        %322 = vmatmul.mubr.bf16.gmra.mxu0 %v284
        %v323 = vpop.f32.mrf.mxu0
        %v324 = vadd.f32 0.0, %v323
        %v325 = vpop.f32.mrf.mxu0
        %v326 = vpop.f32.mrf.mxu0
        %v327 = vpop.f32.mrf.mxu0
        %328 = vdwg.mxu0
        %v330 = vsel %vm282, %v263, 0
        %v333 = vsel %vm282, %v271, 0
        %335 = vmatprep.subr.bf16.mxu0 0
        %336 = vmatpush1.bf16.xpose.msra.mxu0 0
        %337 = vmatprep.subr.bf16.mxu0 0
        %338 = vmatpush1.bf16.xpose.msra.mxu0 0
        %339 = vmatprep.subr.bf16.mxu0 0
        %340 = vmatpush1.bf16.xpose.msra.mxu0 0
        %341 = vmatprep.subr.bf16.mxu0 0
        %342 = vmatpush1.bf16.xpose.msra.mxu0 0
        %343 = vmatprep.subr.bf16.mxu0 0
        %344 = vmatpush1.bf16.xpose.msra.mxu0 0
        %345 = vmatprep.subr.bf16.mxu0 0
        %346 = vmatpush1.bf16.xpose.msra.mxu0 0
        %347 = vmatprep.subr.bf16.mxu0 0
        %348 = vmatpush1.bf16.xpose.msra.mxu0 0
        %349 = vmatprep.subr.bf16.mxu0 0
        %350 = vmatpush1.bf16.xpose.msra.mxu0 %v333
        %351 = vmatprep.subr.bf16.mxu0 0
        %352 = vmatpush2.bf16.xpose.msra.mxu0 0
        %353 = vmatprep.subr.bf16.mxu0 0
        %354 = vmatpush2.bf16.xpose.msra.mxu0 0
        %355 = vmatprep.subr.bf16.mxu0 0
        %356 = vmatpush2.bf16.xpose.msra.mxu0 0
        %357 = vmatprep.subr.bf16.mxu0 0
        %358 = vmatpush2.bf16.xpose.msra.mxu0 0
        %359 = vmatprep.subr.bf16.mxu0 0
        %360 = vmatpush2.bf16.xpose.msra.mxu0 0
        %361 = vmatprep.subr.bf16.mxu0 0
        %362 = vmatpush2.bf16.xpose.msra.mxu0 0
        %363 = vmatprep.subr.bf16.mxu0 0
        %364 = vmatpush2.bf16.xpose.msra.mxu0 0
        %365 = vmatprep.subr.bf16.mxu0 0
        %366 = vmatpush2.bf16.xpose.msra.mxu0 0
        %367 = vmatprep.mubr.bf16.mxu0 0
        %368 = vmatmul.mubr.bf16.gmra.mxu0 %v330
        %v369 = vpop.f32.mrf.mxu0
        %v370 = vadd.f32 0.0, %v369
        %v371 = vpop.f32.mrf.mxu0
        %v372 = vpop.f32.mrf.mxu0
        %v373 = vpop.f32.mrf.mxu0
        %374 = vdwg.mxu0
        %v376 = vsel %vm282, %v264, 0
        %v379 = vsel %vm282, %v272, 0
        %381 = vmatprep.subr.bf16.mxu0 0
        %382 = vmatpush1.bf16.xpose.msra.mxu0 0
        %383 = vmatprep.subr.bf16.mxu0 0
        %384 = vmatpush1.bf16.xpose.msra.mxu0 0
        %385 = vmatprep.subr.bf16.mxu0 0
        %386 = vmatpush1.bf16.xpose.msra.mxu0 0
        %387 = vmatprep.subr.bf16.mxu0 0
        %388 = vmatpush1.bf16.xpose.msra.mxu0 0
        %389 = vmatprep.subr.bf16.mxu0 0
        %390 = vmatpush1.bf16.xpose.msra.mxu0 0
        %391 = vmatprep.subr.bf16.mxu0 0
        %392 = vmatpush1.bf16.xpose.msra.mxu0 0
        %393 = vmatprep.subr.bf16.mxu0 0
        %394 = vmatpush1.bf16.xpose.msra.mxu0 0
        %395 = vmatprep.subr.bf16.mxu0 0
        %396 = vmatpush1.bf16.xpose.msra.mxu0 %v379
        %397 = vmatprep.subr.bf16.mxu0 0
        %398 = vmatpush2.bf16.xpose.msra.mxu0 0
        %399 = vmatprep.subr.bf16.mxu0 0
        %400 = vmatpush2.bf16.xpose.msra.mxu0 0
        %401 = vmatprep.subr.bf16.mxu0 0
        %402 = vmatpush2.bf16.xpose.msra.mxu0 0
        %403 = vmatprep.subr.bf16.mxu0 0
        %404 = vmatpush2.bf16.xpose.msra.mxu0 0
        %405 = vmatprep.subr.bf16.mxu0 0
        %406 = vmatpush2.bf16.xpose.msra.mxu0 0
        %407 = vmatprep.subr.bf16.mxu0 0
        %408 = vmatpush2.bf16.xpose.msra.mxu0 0
        %409 = vmatprep.subr.bf16.mxu0 0
        %410 = vmatpush2.bf16.xpose.msra.mxu0 0
        %411 = vmatprep.subr.bf16.mxu0 0
        %412 = vmatpush2.bf16.xpose.msra.mxu0 0
        %413 = vmatprep.mubr.bf16.mxu0 0
        %414 = vmatmul.mubr.bf16.gmra.mxu0 %v376
        %v415 = vpop.f32.mrf.mxu0
        %v416 = vadd.f32 0.0, %v415
        %v417 = vpop.f32.mrf.mxu0
        %v418 = vpop.f32.mrf.mxu0
        %v419 = vpop.f32.mrf.mxu0
        %420 = vdwg.mxu0
        %v422 = vsel %vm282, %v265, 0
        %v425 = vsel %vm282, %v273, 0
        %427 = vmatprep.subr.bf16.mxu0 0
        %428 = vmatpush1.bf16.xpose.msra.mxu0 0
        %429 = vmatprep.subr.bf16.mxu0 0
        %430 = vmatpush1.bf16.xpose.msra.mxu0 0
        %431 = vmatprep.subr.bf16.mxu0 0
        %432 = vmatpush1.bf16.xpose.msra.mxu0 0
        %433 = vmatprep.subr.bf16.mxu0 0
        %434 = vmatpush1.bf16.xpose.msra.mxu0 0
        %435 = vmatprep.subr.bf16.mxu0 0
        %436 = vmatpush1.bf16.xpose.msra.mxu0 0
        %437 = vmatprep.subr.bf16.mxu0 0
        %438 = vmatpush1.bf16.xpose.msra.mxu0 0
        %439 = vmatprep.subr.bf16.mxu0 0
        %440 = vmatpush1.bf16.xpose.msra.mxu0 0
        %441 = vmatprep.subr.bf16.mxu0 0
        %442 = vmatpush1.bf16.xpose.msra.mxu0 %v425
        %443 = vmatprep.subr.bf16.mxu0 0
        %444 = vmatpush2.bf16.xpose.msra.mxu0 0
        %445 = vmatprep.subr.bf16.mxu0 0
        %446 = vmatpush2.bf16.xpose.msra.mxu0 0
        %447 = vmatprep.subr.bf16.mxu0 0
        %448 = vmatpush2.bf16.xpose.msra.mxu0 0
        %449 = vmatprep.subr.bf16.mxu0 0
        %450 = vmatpush2.bf16.xpose.msra.mxu0 0
        %451 = vmatprep.subr.bf16.mxu0 0
        %452 = vmatpush2.bf16.xpose.msra.mxu0 0
        %453 = vmatprep.subr.bf16.mxu0 0
        %454 = vmatpush2.bf16.xpose.msra.mxu0 0
        %455 = vmatprep.subr.bf16.mxu0 0
        %456 = vmatpush2.bf16.xpose.msra.mxu0 0
        %457 = vmatprep.subr.bf16.mxu0 0
        %458 = vmatpush2.bf16.xpose.msra.mxu0 0
        %459 = vmatprep.mubr.bf16.mxu0 0
        %460 = vmatmul.mubr.bf16.gmra.mxu0 %v422
        %v461 = vpop.f32.mrf.mxu0
        %v462 = vadd.f32 0.0, %v461
        %v463 = vpop.f32.mrf.mxu0
        %v464 = vpop.f32.mrf.mxu0
        %v465 = vpop.f32.mrf.mxu0
        %466 = vdwg.mxu0
        %v467 = vsel %vm282, %v324, -inf
        %468 = vmax.xlane.f32.xlu0 %v467
        %v469 = vpop.xlane.xlu0 %468
        %v470 = vsel %vm282, %v370, -inf
        %471 = vmax.xlane.f32.xlu0 %v470
        %v472 = vpop.xlane.xlu0 %471
        %v473 = vsel %vm282, %v416, -inf
        %474 = vmax.xlane.f32.xlu0 %v473
        %v475 = vpop.xlane.xlu0 %474
        %v476 = vsel %vm282, %v462, -inf
        %477 = vmax.xlane.f32.xlu0 %v476
        %v478 = vpop.xlane.xlu0 %477
        %v479 = vsub.f32 %v324, %v469
        %v480 = vsub.f32 %v370, %v472
        %v481 = vsub.f32 %v416, %v475
        %v482 = vsub.f32 %v462, %v478
        %v483 = vmul.f32 %v479, 1.442695
        %v484 = vpow.pop %v483
        %v485 = vmul.f32 %v480, 1.442695
        %v486 = vpow.pop %v485
        %v487 = vmul.f32 %v481, 1.442695
        %v488 = vpow.pop %v487
        %v489 = vmul.f32 %v482, 1.442695
        %v490 = vpow.pop %v489
        %v491 = vsel %vm282, %v484, 0.0
        %492 = vadd.xlane.f32.xlu0 %v491
        %v493 = vpop.xlane.xlu0 %492
        %v494 = vsel %vm282, %v486, 0.0
        %495 = vadd.xlane.f32.xlu0 %v494
        %v496 = vpop.xlane.xlu0 %495
        %v497 = vsel %vm282, %v488, 0.0
        %498 = vadd.xlane.f32.xlu0 %v497
        %v499 = vpop.xlane.xlu0 %498
        %v500 = vsel %vm282, %v490, 0.0
        %501 = vadd.xlane.f32.xlu0 %v500
        %v502 = vpop.xlane.xlu0 %501
        %v503 = vrcp.pop %v493
        %v504 = vrcp.pop %v496
        %v505 = vrcp.pop %v499
        %v506 = vrcp.pop %v502
        %v507 = vmul.f32 %v484, %v503
        %v508 = vmul.f32 %v486, %v504
        %v509 = vmul.f32 %v488, %v505
        %v510 = vmul.f32 %v490, %v506
        %511 = vst.msk [vmem:[%s231] sm:$0xff] %vm282, %v507
        %512 = vst.msk [vmem:[%s231 + $0x8] sm:$0xff] %vm282, %v508
        %513 = vst.msk [vmem:[%s231 + $0x10] sm:$0xff] %vm282, %v509
        %514 = vst.msk [vmem:[%s231 + $0x18] sm:$0xff] %vm282, %v510
        %v515 = vpack.c.bf16 %v507, %v507
        %v516 = vpack.c.bf16 %v508, %v508
        %v517 = vpack.c.bf16 %v509, %v509
        %v518 = vpack.c.bf16 %v510, %v510
        %v520 = vsel %vm282, %v515, 0
        %vm522 = vcmask 1043456
        %v524 = vsel %vm522, %v278, 0
        %526 = vmatprep.subr.bf16.mxu0 0
        %527 = vmatpush1.bf16.msra.mxu0 0
        %528 = vmatprep.subr.bf16.mxu0 0
        %529 = vmatpush1.bf16.msra.mxu0 0
        %530 = vmatprep.subr.bf16.mxu0 0
        %531 = vmatpush1.bf16.msra.mxu0 0
        %532 = vmatprep.subr.bf16.mxu0 0
        %533 = vmatpush1.bf16.msra.mxu0 0
        %534 = vmatprep.subr.bf16.mxu0 0
        %535 = vmatpush1.bf16.msra.mxu0 0
        %536 = vmatprep.subr.bf16.mxu0 0
        %537 = vmatpush1.bf16.msra.mxu0 0
        %538 = vmatprep.subr.bf16.mxu0 0
        %539 = vmatpush1.bf16.msra.mxu0 0
        %540 = vmatprep.subr.bf16.mxu0 0
        %541 = vmatpush1.bf16.msra.mxu0 %v524
        %542 = vmatprep.subr.bf16.mxu0 0
        %543 = vmatpush2.bf16.msra.mxu0 0
        %544 = vmatprep.subr.bf16.mxu0 0
        %545 = vmatpush2.bf16.msra.mxu0 0
        %546 = vmatprep.subr.bf16.mxu0 0
        %547 = vmatpush2.bf16.msra.mxu0 0
        %548 = vmatprep.subr.bf16.mxu0 0
        %549 = vmatpush2.bf16.msra.mxu0 0
        %550 = vmatprep.subr.bf16.mxu0 0
        %551 = vmatpush2.bf16.msra.mxu0 0
        %552 = vmatprep.subr.bf16.mxu0 0
        %553 = vmatpush2.bf16.msra.mxu0 0
        %554 = vmatprep.subr.bf16.mxu0 0
        %555 = vmatpush2.bf16.msra.mxu0 0
        %556 = vmatprep.subr.bf16.mxu0 0
        %557 = vmatpush2.bf16.msra.mxu0 0
        %558 = vmatprep.mubr.bf16.mxu0 0
        %559 = vmatmul.mubr.bf16.gmra.mxu0 %v520
        %v560 = vpop.f32.mrf.mxu0
        %v561 = vadd.f32 0.0, %v560
        %v562 = vpop.f32.mrf.mxu0
        %v563 = vpop.f32.mrf.mxu0
        %v564 = vpop.f32.mrf.mxu0
        %565 = vdwg.mxu0
        %v567 = vsel %vm282, %v516, 0
        %v570 = vsel %vm522, %v279, 0
        %572 = vmatprep.subr.bf16.mxu0 0
        %573 = vmatpush1.bf16.msra.mxu0 0
        %574 = vmatprep.subr.bf16.mxu0 0
        %575 = vmatpush1.bf16.msra.mxu0 0
        %576 = vmatprep.subr.bf16.mxu0 0
        %577 = vmatpush1.bf16.msra.mxu0 0
        %578 = vmatprep.subr.bf16.mxu0 0
        %579 = vmatpush1.bf16.msra.mxu0 0
        %580 = vmatprep.subr.bf16.mxu0 0
        %581 = vmatpush1.bf16.msra.mxu0 0
        %582 = vmatprep.subr.bf16.mxu0 0
        %583 = vmatpush1.bf16.msra.mxu0 0
        %584 = vmatprep.subr.bf16.mxu0 0
        %585 = vmatpush1.bf16.msra.mxu0 0
        %586 = vmatprep.subr.bf16.mxu0 0
        %587 = vmatpush1.bf16.msra.mxu0 %v570
        %588 = vmatprep.subr.bf16.mxu0 0
        %589 = vmatpush2.bf16.msra.mxu0 0
        %590 = vmatprep.subr.bf16.mxu0 0
        %591 = vmatpush2.bf16.msra.mxu0 0
        %592 = vmatprep.subr.bf16.mxu0 0
        %593 = vmatpush2.bf16.msra.mxu0 0
        %594 = vmatprep.subr.bf16.mxu0 0
        %595 = vmatpush2.bf16.msra.mxu0 0
        %596 = vmatprep.subr.bf16.mxu0 0
        %597 = vmatpush2.bf16.msra.mxu0 0
        %598 = vmatprep.subr.bf16.mxu0 0
        %599 = vmatpush2.bf16.msra.mxu0 0
        %600 = vmatprep.subr.bf16.mxu0 0
        %601 = vmatpush2.bf16.msra.mxu0 0
        %602 = vmatprep.subr.bf16.mxu0 0
        %603 = vmatpush2.bf16.msra.mxu0 0
        %604 = vmatprep.mubr.bf16.mxu0 0
        %605 = vmatmul.mubr.bf16.gmra.mxu0 %v567
        %v606 = vpop.f32.mrf.mxu0
        %v607 = vadd.f32 0.0, %v606
        %v608 = vpop.f32.mrf.mxu0
        %v609 = vpop.f32.mrf.mxu0
        %v610 = vpop.f32.mrf.mxu0
        %611 = vdwg.mxu0
        %v613 = vsel %vm282, %v517, 0
        %v616 = vsel %vm522, %v280, 0
        %618 = vmatprep.subr.bf16.mxu0 0
        %619 = vmatpush1.bf16.msra.mxu0 0
        %620 = vmatprep.subr.bf16.mxu0 0
        %621 = vmatpush1.bf16.msra.mxu0 0
        %622 = vmatprep.subr.bf16.mxu0 0
        %623 = vmatpush1.bf16.msra.mxu0 0
        %624 = vmatprep.subr.bf16.mxu0 0
        %625 = vmatpush1.bf16.msra.mxu0 0
        %626 = vmatprep.subr.bf16.mxu0 0
        %627 = vmatpush1.bf16.msra.mxu0 0
        %628 = vmatprep.subr.bf16.mxu0 0
        %629 = vmatpush1.bf16.msra.mxu0 0
        %630 = vmatprep.subr.bf16.mxu0 0
        %631 = vmatpush1.bf16.msra.mxu0 0
        %632 = vmatprep.subr.bf16.mxu0 0
        %633 = vmatpush1.bf16.msra.mxu0 %v616
        %634 = vmatprep.subr.bf16.mxu0 0
        %635 = vmatpush2.bf16.msra.mxu0 0
        %636 = vmatprep.subr.bf16.mxu0 0
        %637 = vmatpush2.bf16.msra.mxu0 0
        %638 = vmatprep.subr.bf16.mxu0 0
        %639 = vmatpush2.bf16.msra.mxu0 0
        %640 = vmatprep.subr.bf16.mxu0 0
        %641 = vmatpush2.bf16.msra.mxu0 0
        %642 = vmatprep.subr.bf16.mxu0 0
        %643 = vmatpush2.bf16.msra.mxu0 0
        %644 = vmatprep.subr.bf16.mxu0 0
        %645 = vmatpush2.bf16.msra.mxu0 0
        %646 = vmatprep.subr.bf16.mxu0 0
        %647 = vmatpush2.bf16.msra.mxu0 0
        %648 = vmatprep.subr.bf16.mxu0 0
        %649 = vmatpush2.bf16.msra.mxu0 0
        %650 = vmatprep.mubr.bf16.mxu0 0
        %651 = vmatmul.mubr.bf16.gmra.mxu0 %v613
        %v652 = vpop.f32.mrf.mxu0
        %v653 = vadd.f32 0.0, %v652
        %v654 = vpop.f32.mrf.mxu0
        %v655 = vpop.f32.mrf.mxu0
        %v656 = vpop.f32.mrf.mxu0
        %657 = vdwg.mxu0
        %v659 = vsel %vm282, %v518, 0
        %v662 = vsel %vm522, %v281, 0
        %664 = vmatprep.subr.bf16.mxu0 0
        %665 = vmatpush1.bf16.msra.mxu0 0
        %666 = vmatprep.subr.bf16.mxu0 0
        %667 = vmatpush1.bf16.msra.mxu0 0
        %668 = vmatprep.subr.bf16.mxu0 0
        %669 = vmatpush1.bf16.msra.mxu0 0
        %670 = vmatprep.subr.bf16.mxu0 0
        %671 = vmatpush1.bf16.msra.mxu0 0
        %672 = vmatprep.subr.bf16.mxu0 0
        %673 = vmatpush1.bf16.msra.mxu0 0
        %674 = vmatprep.subr.bf16.mxu0 0
        %675 = vmatpush1.bf16.msra.mxu0 0
        %676 = vmatprep.subr.bf16.mxu0 0
        %677 = vmatpush1.bf16.msra.mxu0 0
        %678 = vmatprep.subr.bf16.mxu0 0
        %679 = vmatpush1.bf16.msra.mxu0 %v662
        %680 = vmatprep.subr.bf16.mxu0 0
        %681 = vmatpush2.bf16.msra.mxu0 0
        %682 = vmatprep.subr.bf16.mxu0 0
        %683 = vmatpush2.bf16.msra.mxu0 0
        %684 = vmatprep.subr.bf16.mxu0 0
        %685 = vmatpush2.bf16.msra.mxu0 0
        %686 = vmatprep.subr.bf16.mxu0 0
        %687 = vmatpush2.bf16.msra.mxu0 0
        %688 = vmatprep.subr.bf16.mxu0 0
        %689 = vmatpush2.bf16.msra.mxu0 0
        %690 = vmatprep.subr.bf16.mxu0 0
        %691 = vmatpush2.bf16.msra.mxu0 0
        %692 = vmatprep.subr.bf16.mxu0 0
        %693 = vmatpush2.bf16.msra.mxu0 0
        %694 = vmatprep.subr.bf16.mxu0 0
        %695 = vmatpush2.bf16.msra.mxu0 0
        %696 = vmatprep.mubr.bf16.mxu0 0
        %697 = vmatmul.mubr.bf16.gmra.mxu0 %v659
        %v698 = vpop.f32.mrf.mxu0
        %v699 = vadd.f32 0.0, %v698
        %v700 = vpop.f32.mrf.mxu0
        %v701 = vpop.f32.mrf.mxu0
        %v702 = vpop.f32.mrf.mxu0
        %703 = vdwg.mxu0
        %704 = vst.msk [vmem:[%s254] sm:$0xff] %vm282, %v561
        %705 = vst.msk [vmem:[%s254 + $0x8] sm:$0xff] %vm282, %v607
        %706 = vst.msk [vmem:[%s254 + $0x10] sm:$0xff] %vm282, %v653
        %707 = vst.msk [vmem:[%s254 + $0x18] sm:$0xff] %vm282, %v699
        %s708 = smul.u32 4, %s19
        %p709 = scmp.lt.s32.totalorder %s708, 7
        %s710 = scalar_select %p709, %s708, 7
        %s711 = smul.addr %s710, 8
        %s712 = scalar_lea.vmem %s3, %s711
        %s713 = sand.u32 %s131, 1
        %s714 = scalar_lea.sflag [#allocation3], %s713
        %s715 = sand.u32 %s131, 1
        %s716 = smul.addr %s715, 32
        %s717 = scalar_lea.vmem [#allocation2], %s716
        // Predicated region
        $region33: #{encoder_layer.4} parent=31 // pred_check
          %p718 = pneg %p115
        $region34: #{encoder_layer.4} parent=31 // pred_check_branch
          %720 = sbr.rel (%p718) target = $region36
        $region35: #{encoder_layer.4} parent=31 // pred_region
          %s721 = smul.u32 4, %s19
        $region36: #{encoder_layer.4} parent=31 // pred_fallthru
          _
        // Predicated region
        $region37: #{encoder_layer.4} parent=31 // pred_check
          %p722 = pneg %p141
        $region38: #{encoder_layer.4} parent=31 // pred_check_branch
          %724 = sbr.rel (%p722) target = $region40
        $region39: #{encoder_layer.4} parent=31 // pred_region
          %s725 = smul.u32 4, %s19
          %s727 = ssub.s32 512, 512
          %728 = vsyncadd %s714, %s727
          %s729 = smul.addr %s725, 128
          %s730 = scalar_lea.hbm %s4, %s729
          %s731 = sshll.u32 %s717, 4
          %s732 = int_to_ptr.vmem [resolvable:$true] %s731
          %737 = dma.vmem_to_hbm [thread:$0]  %s732, 512, %s730, %s714, 128, 128, 8
        $region40: #{encoder_layer.4} parent=31 // pred_fallthru
          _
      $region32: #{encoder_layer.4} parent=5 // pred_fallthru
        _
      %p738 = scmp.le.s32.totalorder 2, %s14
      // Predicated region
      $region41: #{encoder_layer.4} parent=5 // pred_check
        %p739 = pneg %p738
      $region42: #{encoder_layer.4} parent=5 // pred_check_branch
        %741 = sbr.rel (%p739) target = $region44
      $region43: #{encoder_layer.4} parent=5 // pred_region
        %s742 = ssub.s32 %s14, 2
        // Predicated region
        $region45: #{encoder_layer.4} parent=43 // pred_check
          %p743 = pneg %p121
        $region46: #{encoder_layer.4} parent=43 // pred_check_branch
          %745 = sbr.rel (%p743) target = $region48
        $region47: #{encoder_layer.4} parent=43 // pred_region
          %s746 = smul.u32 4, %s20
          %p747 = scmp.lt.s32.totalorder %s746, 7
          %s748 = scalar_select %p747, %s746, 7
          %s749 = smul.addr %s748, 8
          %s750 = scalar_lea.vmem %s3, %s749
        $region48: #{encoder_layer.4} parent=43 // pred_fallthru
          _
        // Predicated region
        $region49: #{encoder_layer.4} parent=43 // pred_check
          %p751 = pneg %p147
        $region50: #{encoder_layer.4} parent=43 // pred_check_branch
          %753 = sbr.rel (%p751) target = $region52
        $region51: #{encoder_layer.4} parent=43 // pred_region
          %s754 = sand.u32 %s132, 1
          %s755 = scalar_lea.sflag [#allocation3], %s754
          %s756 = sand.u32 %s132, 1
          %s757 = smul.addr %s756, 32
          %s758 = scalar_lea.vmem [#allocation2], %s757
          %759 = dma.done %s755, 512
        $region52: #{encoder_layer.4} parent=43 // pred_fallthru
          _
      $region44: #{encoder_layer.4} parent=5 // pred_fallthru
        _
    $region6: #{encoder_layer.4} parent=1 // loop_footer
      %s18 = sadd.s32 1, %s14
    $region7: #{encoder_layer.4} parent=1 // loop_footer_branch
      %13 = sbr.rel target = $region3
    $region8: #{encoder_layer.4} parent=1 // loop_exit
      _
    %760 = vsyncpa [#allocation3], 1
    %s761 = scalar_lea.sflag [#allocation3], 1
    %762 = vsyncpa %s761, 1

</llo_original>
